<compile_context>
chip_gen: v7x
topology: tpu7x:2x2x1
jax: 0.10.0
libtpu: 0.0.40
codegen_flags: <defaults>
</compile_context>

<pallas_src>
import functools

import jax
import jax.numpy as jnp
from jax import lax
from jax.experimental import pallas as pl
from jax.experimental.pallas import tpu as pltpu

EPS = 1e-5


def dense_layer_kernel(x_ref, g1_ref, b1_ref, w1_ref, g2_ref, b2_ref, w2_ref,
                       mask_ref, *rest, W, drop_rate):
    # x_ref   : (Cin,  N*H*W)   f32   channels-first activations (spatial on lanes)
    # g1/b1   : (Cin,  1)       f32   BN1 gamma / beta
    # w1_ref  : (Cmid, Cin)     bf16  1x1 conv weight
    # g2/b2   : (Cmid, 1)       f32   BN2 gamma / beta
    # w2_ref  : (Cg,   9*Cmid)  bf16  3x3 conv weight, (kh, kw, c) flattened
    # mask_ref: (9, 1, N*H*W)   f32   per-tap zero-padding border masks
    # rest    : [seed_ref (SMEM, only if drop_rate>0)], o_ref
    # o_ref   : (Cg,   N*H*W)   f32   conv2 output, channels-first (lane dense)
    if drop_rate > 0.0:
        seed_ref, o_ref = rest
    else:
        (o_ref,) = rest

    Cin, NHW = x_ref.shape
    Cmid = w1_ref.shape[0]

    x = x_ref[...]

    # ---- BN1 (batch stats, centered variance) folded to scale+shift, + ReLU ----
    mean1 = jnp.mean(x, axis=1, keepdims=True)                        # (Cin, 1)
    var1 = jnp.mean((x - mean1) ** 2, axis=1, keepdims=True)
    scale1 = g1_ref[...] * lax.rsqrt(var1 + EPS)
    shift1 = b1_ref[...] - mean1 * scale1
    h1 = jnp.maximum(x * scale1 + shift1, 0.0)                        # (Cin, NHW)

    # ---- conv1 (1x1) == channel matmul on the MXU (bf16 operands, f32 acc) ----
    bott = jnp.dot(w1_ref[...], h1.astype(jnp.bfloat16),
                   preferred_element_type=jnp.float32)                # (Cmid, NHW)

    # ---- BN2 + ReLU (folded scale/shift, statistics in f32) ----
    mean2 = jnp.mean(bott, axis=1, keepdims=True)                     # (Cmid, 1)
    var2 = jnp.mean((bott - mean2) ** 2, axis=1, keepdims=True)
    scale2 = g2_ref[...] * lax.rsqrt(var2 + EPS)
    shift2 = b2_ref[...] - mean2 * scale2
    h2 = jnp.maximum(bott * scale2 + shift2, 0.0)                     # (Cmid, NHW)

    # ---- conv2 (3x3, stride 1, zero-pad 1) as ONE im2col matmul, K = 9*Cmid ----
    # Flat spatial index j = n*H*W + h*W + w lives on the lane axis, so tap
    # (kh, kw) is h2 rotated by d = (kh-1)*W + (kw-1) lanes (XLU pltpu.roll);
    # image/row borders (and any wrap-around / cross-image leakage of the
    # rotation) land exactly on positions zeroed by the precomputed masks.
    taps = []
    k = 0
    for kh in range(3):
        for kw in range(3):
            d = (kh - 1) * W + (kw - 1)
            if d == 0:
                t = h2                                                # center tap: no shift, no mask
            else:
                t = pltpu.roll(h2, shift=(-d) % NHW, axis=1) * mask_ref[k]
            taps.append(t)                                            # (Cmid, NHW)
            k += 1

    # Sublane-aligned stack (9 blocks of Cmid rows) -> single bf16 MXU operand.
    im2col = jnp.concatenate(taps, axis=0).astype(jnp.bfloat16)       # (9*Cmid, NHW)

    out = jnp.dot(w2_ref[...], im2col,
                  preferred_element_type=jnp.float32)                 # (Cg, NHW)

    # ---- optional dropout (training-mode F.dropout), statically gated ----
    if drop_rate > 0.0:
        pltpu.prng_seed(seed_ref[0])
        bits = pltpu.prng_random_bits(out.shape)
        u = pltpu.bitcast(bits, jnp.uint32)
        thresh = jnp.uint32(min(int(drop_rate * (2 ** 32)), 2 ** 32 - 1))
        keep = (u >= thresh).astype(jnp.float32)
        out = out * keep * (1.0 / (1.0 - drop_rate))

    # Lane-dense store: last dim N*H*W = 512 -> full 128-lane unmasked stores.
    o_ref[...] = out.astype(o_ref.dtype)


def _full_spec(shape):
    nd = len(shape)
    return pl.BlockSpec(shape, lambda i, nd=nd: (0,) * nd)


@functools.partial(jax.jit, static_argnames=("drop_rate",))
def dense_layer_forward(x_nchw, params, drop_rate=0.0, seed=0):
    """x_nchw: (N, Cin, H, W) float32.  Returns (N, growth_rate, H, W)."""
    g1, b1, w1_oihw, g2, b2, w2_oihw = (
        params["g1"], params["b1"], params["w1"],
        params["g2"], params["b2"], params["w2"])

    N, Cin, H, W = x_nchw.shape
    Cmid = w1_oihw.shape[0]
    Cg = w2_oihw.shape[0]
    NHW = N * H * W

    # Channels-first 2D activations: (Cin, N*H*W); spatial -> lane axis.
    x2d = jnp.transpose(x_nchw, (1, 0, 2, 3)).reshape(Cin, NHW).astype(jnp.float32)
    # conv1 weight (Cmid, Cin, 1, 1) -> (Cmid, Cin), bf16 MXU operand.
    w1 = w1_oihw[:, :, 0, 0].astype(jnp.bfloat16)
    # conv2 weight (Cg, Cmid, 3, 3) -> (Cg, kh, kw, Cmid) -> (Cg, 9*Cmid), bf16.
    w2 = jnp.transpose(w2_oihw, (0, 2, 3, 1)).reshape(Cg, 9 * Cmid).astype(jnp.bfloat16)

    g1r = g1.reshape(Cin, 1).astype(jnp.float32)
    b1r = b1.reshape(Cin, 1).astype(jnp.float32)
    g2r = g2.reshape(Cmid, 1).astype(jnp.float32)
    b2r = b2.reshape(Cmid, 1).astype(jnp.float32)

    # Precompute per-tap zero-padding masks on the flat spatial (lane) index.
    jj = jnp.arange(NHW, dtype=jnp.int32)
    hh = (jj // W) % H
    ww = jj % W
    masks = []
    for kh in range(3):
        for kw in range(3):
            dh, dw = kh - 1, kw - 1
            masks.append((hh + dh >= 0) & (hh + dh < H) &
                         (ww + dw >= 0) & (ww + dw < W))
    mask = jnp.stack(masks).astype(jnp.float32).reshape(9, 1, NHW)

    inputs = [x2d, g1r, b1r, w1, g2r, b2r, w2, mask]
    in_specs = [
        _full_spec((Cin, NHW)),
        _full_spec((Cin, 1)),
        _full_spec((Cin, 1)),
        _full_spec((Cmid, Cin)),
        _full_spec((Cmid, 1)),
        _full_spec((Cmid, 1)),
        _full_spec((Cg, 9 * Cmid)),
        _full_spec((9, 1, NHW)),
    ]
    if drop_rate > 0.0:
        inputs.append(jnp.asarray(seed, jnp.int32).reshape(1))
        in_specs.append(pl.BlockSpec(memory_space=pltpu.MemorySpace.SMEM))

    kernel = functools.partial(dense_layer_kernel, W=W, drop_rate=float(drop_rate))

    out_cf = pl.pallas_call(
        kernel,
        out_shape=jax.ShapeDtypeStruct((Cg, NHW), jnp.float32),
        grid_spec=pltpu.PrefetchScalarGridSpec(
            num_scalar_prefetch=0,
            grid=(1,),
            in_specs=in_specs,
            out_specs=_full_spec((Cg, NHW)),
        ),
        compiler_params=pltpu.CompilerParams(
            dimension_semantics=("arbitrary",),
            vmem_limit_bytes=32 * 1024 * 1024),
    )(*inputs)

    # (Cg, N*H*W) -> (N, Cg, H, W), i.e. NCHW matching the PyTorch module.
    return jnp.transpose(out_cf.reshape(Cg, N, H, W), (1, 0, 2, 3))


def reference_forward(x_nchw, params):
    """Pure-JAX (non-Pallas) f32 reference, NCHW throughout (drop_rate=0)."""
    g1, b1, w1, g2, b2, w2 = (params["g1"], params["b1"], params["w1"],
                              params["g2"], params["b2"], params["w2"])
    x = x_nchw.astype(jnp.float32)

    m1 = jnp.mean(x, axis=(0, 2, 3), keepdims=True)
    v1 = jnp.mean((x - m1) ** 2, axis=(0, 2, 3), keepdims=True)
    h = (x - m1) * lax.rsqrt(v1 + EPS) * g1.reshape(1, -1, 1, 1) + b1.reshape(1, -1, 1, 1)
    h = jnp.maximum(h, 0.0)
    bott = lax.conv_general_dilated(h, w1, (1, 1), "VALID",
                                    dimension_numbers=("NCHW", "OIHW", "NCHW"))
    m2 = jnp.mean(bott, axis=(0, 2, 3), keepdims=True)
    v2 = jnp.mean((bott - m2) ** 2, axis=(0, 2, 3), keepdims=True)
    h2 = (bott - m2) * lax.rsqrt(v2 + EPS) * g2.reshape(1, -1, 1, 1) + b2.reshape(1, -1, 1, 1)
    h2 = jnp.maximum(h2, 0.0)
    out = lax.conv_general_dilated(h2, w2, (1, 1), ((1, 1), (1, 1)),
                                   dimension_numbers=("NCHW", "OIHW", "NCHW"))
    return out


def init_params(key, input_channels, growth_rate, bn_size):
    Cmid = bn_size * growth_rate
    k = jax.random.split(key, 6)
    return {
        "g1": 1.0 + 0.1 * jax.random.normal(k[0], (input_channels,), jnp.float32),
        "b1": 0.1 * jax.random.normal(k[1], (input_channels,), jnp.float32),
        "w1": 0.1 * jax.random.normal(k[2], (Cmid, input_channels, 1, 1), jnp.float32),
        "g2": 1.0 + 0.1 * jax.random.normal(k[3], (Cmid,), jnp.float32),
        "b2": 0.1 * jax.random.normal(k[4], (Cmid,), jnp.float32),
        "w2": 0.1 * jax.random.normal(k[5], (growth_rate, Cmid, 3, 3), jnp.float32),
    }


if __name__ == "__main__":
    # Small shapes consistent with the module: batch=2, input_channels=4,
    # spatial 16x16, growth_rate=8, bn_size=4, drop_rate=0.0.
    N, Cin, H, W = 2, 4, 16, 16
    growth_rate, bn_size, drop_rate = 8, 4, 0.0

    key = jax.random.PRNGKey(0)
    kx, kp = jax.random.split(key)
    x = jax.random.normal(kx, (N, Cin, H, W), jnp.float32)
    params = init_params(kp, Cin, growth_rate, bn_size)

    out = jax.block_until_ready(dense_layer_forward(x, params, drop_rate=drop_rate))
    ref = jax.block_until_ready(reference_forward(x, params))

    assert out.shape == (N, growth_rate, H, W), out.shape
    err = float(jnp.max(jnp.abs(out - ref)))
    ref_scale = float(jnp.max(jnp.abs(ref)))
    # bf16 MXU operands (with f32 accumulation / f32 BN stats) -> validate at
    # bf16-level tolerance against the pure-f32 reference.
    if err > 3e-2 * ref_scale + 1e-5:
        raise AssertionError(
            f"Pallas kernel mismatch vs reference: max abs err {err:.3e} "
            f"(ref max {ref_scale:.3e})")
    print("KERNEL_OK")
</pallas_src>

<mosaic_0001>
module attributes {stable_mosaic.version = 11 : i64} {
  func.func @dense_layer_kernel(%arg0: i32, %arg1: memref<4x512xf32, #tpu.memory_space<vmem>>, %arg2: memref<4x1xf32, #tpu.memory_space<vmem>>, %arg3: memref<4x1xf32, #tpu.memory_space<vmem>>, %arg4: memref<32x4xbf16, #tpu.memory_space<vmem>>, %arg5: memref<32x1xf32, #tpu.memory_space<vmem>>, %arg6: memref<32x1xf32, #tpu.memory_space<vmem>>, %arg7: memref<8x288xbf16, #tpu.memory_space<vmem>>, %arg8: memref<9x1x512xf32, #tpu.memory_space<vmem>>, %arg9: memref<8x512xf32, #tpu.memory_space<vmem>>) attributes {dimension_semantics = [#tpu.dimension_semantics<arbitrary>], iteration_bounds = array<i64: 1>, scalar_prefetch = 0 : i64, scratch_operands = 0 : i64, tpu.core_type = #tpu.core_type<tc>, window_params = [{pipeline_mode = #tpu.pipeline_mode<synchronous>, transform_indices = @transform_0, window_bounds = array<i64: 4, 512>}, {pipeline_mode = #tpu.pipeline_mode<synchronous>, transform_indices = @transform_1, window_bounds = array<i64: 4, 1>}, {pipeline_mode = #tpu.pipeline_mode<synchronous>, transform_indices = @transform_2, window_bounds = array<i64: 4, 1>}, {pipeline_mode = #tpu.pipeline_mode<synchronous>, transform_indices = @transform_3, window_bounds = array<i64: 32, 4>}, {pipeline_mode = #tpu.pipeline_mode<synchronous>, transform_indices = @transform_4, window_bounds = array<i64: 32, 1>}, {pipeline_mode = #tpu.pipeline_mode<synchronous>, transform_indices = @transform_5, window_bounds = array<i64: 32, 1>}, {pipeline_mode = #tpu.pipeline_mode<synchronous>, transform_indices = @transform_6, window_bounds = array<i64: 8, 288>}, {pipeline_mode = #tpu.pipeline_mode<synchronous>, transform_indices = @transform_7, window_bounds = array<i64: 9, 1, 512>}, {pipeline_mode = #tpu.pipeline_mode<synchronous>, transform_indices = @transform_8, window_bounds = array<i64: 8, 512>}]} {
    %c0 = arith.constant 0 : index
    %c0_0 = arith.constant 0 : index
    %0 = vector.load %arg1[%c0, %c0_0] : memref<4x512xf32, #tpu.memory_space<vmem>>, vector<4x512xf32>
    %cst = arith.constant dense<0.000000e+00> : vector<4xf32>
    %1 = vector.multi_reduction <add>, %0, %cst [1] : vector<4x512xf32> to vector<4xf32>
    %2 = vector.shape_cast %1 : vector<4xf32> to vector<4x1xf32>
    %cst_1 = arith.constant 5.120000e+02 : f32
    %3 = vector.broadcast %cst_1 : f32 to vector<4x1xf32>
    %4 = arith.divf %2, %3 : vector<4x1xf32>
    %5 = vector.broadcast %4 : vector<4x1xf32> to vector<4x512xf32>
    %6 = arith.subf %0, %5 : vector<4x512xf32>
    %7 = arith.mulf %6, %6 : vector<4x512xf32>
    %cst_2 = arith.constant dense<0.000000e+00> : vector<4xf32>
    %8 = vector.multi_reduction <add>, %7, %cst_2 [1] : vector<4x512xf32> to vector<4xf32>
    %9 = vector.shape_cast %8 : vector<4xf32> to vector<4x1xf32>
    %cst_3 = arith.constant 5.120000e+02 : f32
    %10 = vector.broadcast %cst_3 : f32 to vector<4x1xf32>
    %11 = arith.divf %9, %10 : vector<4x1xf32>
    %c0_4 = arith.constant 0 : index
    %c0_5 = arith.constant 0 : index
    %12 = vector.load %arg2[%c0_4, %c0_5] : memref<4x1xf32, #tpu.memory_space<vmem>>, vector<4x1xf32>
    %cst_6 = arith.constant 9.99999974E-6 : f32
    %13 = vector.broadcast %cst_6 : f32 to vector<4x1xf32>
    %14 = arith.addf %11, %13 : vector<4x1xf32>
    %15 = math.rsqrt %14 : vector<4x1xf32>
    %16 = arith.mulf %12, %15 : vector<4x1xf32>
    %c0_7 = arith.constant 0 : index
    %c0_8 = arith.constant 0 : index
    %17 = vector.load %arg3[%c0_7, %c0_8] : memref<4x1xf32, #tpu.memory_space<vmem>>, vector<4x1xf32>
    %18 = arith.mulf %4, %16 : vector<4x1xf32>
    %19 = arith.subf %17, %18 : vector<4x1xf32>
    %20 = vector.broadcast %16 : vector<4x1xf32> to vector<4x512xf32>
    %21 = arith.mulf %0, %20 : vector<4x512xf32>
    %22 = vector.broadcast %19 : vector<4x1xf32> to vector<4x512xf32>
    %23 = arith.addf %21, %22 : vector<4x512xf32>
    %cst_9 = arith.constant 0.000000e+00 : f32
    %24 = vector.broadcast %cst_9 : f32 to vector<4x512xf32>
    %25 = arith.maximumf %23, %24 : vector<4x512xf32>
    %c0_10 = arith.constant 0 : index
    %c0_11 = arith.constant 0 : index
    %26 = vector.load %arg4[%c0_10, %c0_11] : memref<32x4xbf16, #tpu.memory_space<vmem>>, vector<32x4xbf16>
    %27 = arith.truncf %25 : vector<4x512xf32> to vector<4x512xbf16>
    %cst_12 = arith.constant dense<0.000000e+00> : vector<32x512xf32>
    %28 = tpu.matmul %26, %27, %cst_12 {dimension_numbers = #tpu.dot_dimension_numbers<[1], [0], [0], [1], [0, 0, 1, 1], [], []>} : vector<32x4xbf16>, vector<4x512xbf16>, vector<32x512xf32> -> vector<32x512xf32>
    %cst_13 = arith.constant dense<0.000000e+00> : vector<32xf32>
    %29 = vector.multi_reduction <add>, %28, %cst_13 [1] : vector<32x512xf32> to vector<32xf32>
    %30 = vector.shape_cast %29 : vector<32xf32> to vector<32x1xf32>
    %cst_14 = arith.constant 5.120000e+02 : f32
    %31 = vector.broadcast %cst_14 : f32 to vector<32x1xf32>
    %32 = arith.divf %30, %31 : vector<32x1xf32>
    %33 = vector.broadcast %32 : vector<32x1xf32> to vector<32x512xf32>
    %34 = arith.subf %28, %33 : vector<32x512xf32>
    %35 = arith.mulf %34, %34 : vector<32x512xf32>
    %cst_15 = arith.constant dense<0.000000e+00> : vector<32xf32>
    %36 = vector.multi_reduction <add>, %35, %cst_15 [1] : vector<32x512xf32> to vector<32xf32>
    %37 = vector.shape_cast %36 : vector<32xf32> to vector<32x1xf32>
    %cst_16 = arith.constant 5.120000e+02 : f32
    %38 = vector.broadcast %cst_16 : f32 to vector<32x1xf32>
    %39 = arith.divf %37, %38 : vector<32x1xf32>
    %c0_17 = arith.constant 0 : index
    %c0_18 = arith.constant 0 : index
    %40 = vector.load %arg5[%c0_17, %c0_18] : memref<32x1xf32, #tpu.memory_space<vmem>>, vector<32x1xf32>
    %cst_19 = arith.constant 9.99999974E-6 : f32
    %41 = vector.broadcast %cst_19 : f32 to vector<32x1xf32>
    %42 = arith.addf %39, %41 : vector<32x1xf32>
    %43 = math.rsqrt %42 : vector<32x1xf32>
    %44 = arith.mulf %40, %43 : vector<32x1xf32>
    %c0_20 = arith.constant 0 : index
    %c0_21 = arith.constant 0 : index
    %45 = vector.load %arg6[%c0_20, %c0_21] : memref<32x1xf32, #tpu.memory_space<vmem>>, vector<32x1xf32>
    %46 = arith.mulf %32, %44 : vector<32x1xf32>
    %47 = arith.subf %45, %46 : vector<32x1xf32>
    %48 = vector.broadcast %44 : vector<32x1xf32> to vector<32x512xf32>
    %49 = arith.mulf %28, %48 : vector<32x512xf32>
    %50 = vector.broadcast %47 : vector<32x1xf32> to vector<32x512xf32>
    %51 = arith.addf %49, %50 : vector<32x512xf32>
    %cst_22 = arith.constant 0.000000e+00 : f32
    %52 = vector.broadcast %cst_22 : f32 to vector<32x512xf32>
    %53 = arith.maximumf %51, %52 : vector<32x512xf32>
    %c17_i32 = arith.constant 17 : i32
    %54 = tpu.dynamic_rotate %53 by %c17_i32 dim 1 : vector<32x512xf32>, i32 -> vector<32x512xf32>
    %c0_23 = arith.constant 0 : index
    %c0_24 = arith.constant 0 : index
    %c0_25 = arith.constant 0 : index
    %55 = vector.load %arg8[%c0_23, %c0_24, %c0_25] : memref<9x1x512xf32, #tpu.memory_space<vmem>>, vector<1x1x512xf32>
    %56 = vector.shape_cast %55 : vector<1x1x512xf32> to vector<1x512xf32>
    %57 = vector.broadcast %56 : vector<1x512xf32> to vector<32x512xf32>
    %58 = arith.mulf %54, %57 : vector<32x512xf32>
    %c16_i32 = arith.constant 16 : i32
    %59 = tpu.dynamic_rotate %53 by %c16_i32 dim 1 : vector<32x512xf32>, i32 -> vector<32x512xf32>
    %c1 = arith.constant 1 : index
    %c0_26 = arith.constant 0 : index
    %c0_27 = arith.constant 0 : index
    %60 = vector.load %arg8[%c1, %c0_26, %c0_27] : memref<9x1x512xf32, #tpu.memory_space<vmem>>, vector<1x1x512xf32>
    %61 = vector.shape_cast %60 : vector<1x1x512xf32> to vector<1x512xf32>
    %62 = vector.broadcast %61 : vector<1x512xf32> to vector<32x512xf32>
    %63 = arith.mulf %59, %62 : vector<32x512xf32>
    %c15_i32 = arith.constant 15 : i32
    %64 = tpu.dynamic_rotate %53 by %c15_i32 dim 1 : vector<32x512xf32>, i32 -> vector<32x512xf32>
    %c2 = arith.constant 2 : index
    %c0_28 = arith.constant 0 : index
    %c0_29 = arith.constant 0 : index
    %65 = vector.load %arg8[%c2, %c0_28, %c0_29] : memref<9x1x512xf32, #tpu.memory_space<vmem>>, vector<1x1x512xf32>
    %66 = vector.shape_cast %65 : vector<1x1x512xf32> to vector<1x512xf32>
    %67 = vector.broadcast %66 : vector<1x512xf32> to vector<32x512xf32>
    %68 = arith.mulf %64, %67 : vector<32x512xf32>
    %c1_i32 = arith.constant 1 : i32
    %69 = tpu.dynamic_rotate %53 by %c1_i32 dim 1 : vector<32x512xf32>, i32 -> vector<32x512xf32>
    %c3 = arith.constant 3 : index
    %c0_30 = arith.constant 0 : index
    %c0_31 = arith.constant 0 : index
    %70 = vector.load %arg8[%c3, %c0_30, %c0_31] : memref<9x1x512xf32, #tpu.memory_space<vmem>>, vector<1x1x512xf32>
    %71 = vector.shape_cast %70 : vector<1x1x512xf32> to vector<1x512xf32>
    %72 = vector.broadcast %71 : vector<1x512xf32> to vector<32x512xf32>
    %73 = arith.mulf %69, %72 : vector<32x512xf32>
    %c511_i32 = arith.constant 511 : i32
    %74 = tpu.dynamic_rotate %53 by %c511_i32 dim 1 : vector<32x512xf32>, i32 -> vector<32x512xf32>
    %c5 = arith.constant 5 : index
    %c0_32 = arith.constant 0 : index
    %c0_33 = arith.constant 0 : index
    %75 = vector.load %arg8[%c5, %c0_32, %c0_33] : memref<9x1x512xf32, #tpu.memory_space<vmem>>, vector<1x1x512xf32>
    %76 = vector.shape_cast %75 : vector<1x1x512xf32> to vector<1x512xf32>
    %77 = vector.broadcast %76 : vector<1x512xf32> to vector<32x512xf32>
    %78 = arith.mulf %74, %77 : vector<32x512xf32>
    %c497_i32 = arith.constant 497 : i32
    %79 = tpu.dynamic_rotate %53 by %c497_i32 dim 1 : vector<32x512xf32>, i32 -> vector<32x512xf32>
    %c6 = arith.constant 6 : index
    %c0_34 = arith.constant 0 : index
    %c0_35 = arith.constant 0 : index
    %80 = vector.load %arg8[%c6, %c0_34, %c0_35] : memref<9x1x512xf32, #tpu.memory_space<vmem>>, vector<1x1x512xf32>
    %81 = vector.shape_cast %80 : vector<1x1x512xf32> to vector<1x512xf32>
    %82 = vector.broadcast %81 : vector<1x512xf32> to vector<32x512xf32>
    %83 = arith.mulf %79, %82 : vector<32x512xf32>
    %c496_i32 = arith.constant 496 : i32
    %84 = tpu.dynamic_rotate %53 by %c496_i32 dim 1 : vector<32x512xf32>, i32 -> vector<32x512xf32>
    %c7 = arith.constant 7 : index
    %c0_36 = arith.constant 0 : index
    %c0_37 = arith.constant 0 : index
    %85 = vector.load %arg8[%c7, %c0_36, %c0_37] : memref<9x1x512xf32, #tpu.memory_space<vmem>>, vector<1x1x512xf32>
    %86 = vector.shape_cast %85 : vector<1x1x512xf32> to vector<1x512xf32>
    %87 = vector.broadcast %86 : vector<1x512xf32> to vector<32x512xf32>
    %88 = arith.mulf %84, %87 : vector<32x512xf32>
    %c495_i32 = arith.constant 495 : i32
    %89 = tpu.dynamic_rotate %53 by %c495_i32 dim 1 : vector<32x512xf32>, i32 -> vector<32x512xf32>
    %c8 = arith.constant 8 : index
    %c0_38 = arith.constant 0 : index
    %c0_39 = arith.constant 0 : index
    %90 = vector.load %arg8[%c8, %c0_38, %c0_39] : memref<9x1x512xf32, #tpu.memory_space<vmem>>, vector<1x1x512xf32>
    %91 = vector.shape_cast %90 : vector<1x1x512xf32> to vector<1x512xf32>
    %92 = vector.broadcast %91 : vector<1x512xf32> to vector<32x512xf32>
    %93 = arith.mulf %89, %92 : vector<32x512xf32>
    %94 = tpu.concatenate %58, %63, %68, %73, %53, %78, %83, %88, %93 in 0 : vector<32x512xf32>, vector<32x512xf32>, vector<32x512xf32>, vector<32x512xf32>, vector<32x512xf32>, vector<32x512xf32>, vector<32x512xf32>, vector<32x512xf32>, vector<32x512xf32> -> vector<288x512xf32>
    %95 = arith.truncf %94 : vector<288x512xf32> to vector<288x512xbf16>
    %c0_40 = arith.constant 0 : index
    %c0_41 = arith.constant 0 : index
    %96 = vector.load %arg7[%c0_40, %c0_41] : memref<8x288xbf16, #tpu.memory_space<vmem>>, vector<8x288xbf16>
    %cst_42 = arith.constant dense<0.000000e+00> : vector<8x512xf32>
    %97 = tpu.matmul %96, %95, %cst_42 {dimension_numbers = #tpu.dot_dimension_numbers<[1], [0], [0], [1], [0, 0, 1, 1], [], []>} : vector<8x288xbf16>, vector<288x512xbf16>, vector<8x512xf32> -> vector<8x512xf32>
    %c0_43 = arith.constant 0 : index
    %c0_44 = arith.constant 0 : index
    %98 = vector.load %arg9[%c0_43, %c0_44] : memref<8x512xf32, #tpu.memory_space<vmem>>, vector<8x512xf32>
    tpu.vector_store %arg9[%c0_43, %c0_44], %97 {strides = array<i32>} : memref<8x512xf32, #tpu.memory_space<vmem>>, vector<8x512xf32>,
    return
  }
  func.func @transform_0(%arg0: i32) -> (i32, i32) {
    %c0_i32 = arith.constant 0 : i32
    %c0_i32_0 = arith.constant 0 : i32
    %c0_i32_1 = arith.constant 0 : i32
    return %c0_i32, %c0_i32_0 : i32, i32
  }
  func.func @transform_1(%arg0: i32) -> (i32, i32) {
    %c0_i32 = arith.constant 0 : i32
    %c0_i32_0 = arith.constant 0 : i32
    %c0_i32_1 = arith.constant 0 : i32
    return %c0_i32, %c0_i32_0 : i32, i32
  }
  func.func @transform_2(%arg0: i32) -> (i32, i32) {
    %c0_i32 = arith.constant 0 : i32
    %c0_i32_0 = arith.constant 0 : i32
    %c0_i32_1 = arith.constant 0 : i32
    return %c0_i32, %c0_i32_0 : i32, i32
  }
  func.func @transform_3(%arg0: i32) -> (i32, i32) {
    %c0_i32 = arith.constant 0 : i32
    %c0_i32_0 = arith.constant 0 : i32
    %c0_i32_1 = arith.constant 0 : i32
    return %c0_i32, %c0_i32_0 : i32, i32
  }
  func.func @transform_4(%arg0: i32) -> (i32, i32) {
    %c0_i32 = arith.constant 0 : i32
    %c0_i32_0 = arith.constant 0 : i32
    %c0_i32_1 = arith.constant 0 : i32
    return %c0_i32, %c0_i32_0 : i32, i32
  }
  func.func @transform_5(%arg0: i32) -> (i32, i32) {
    %c0_i32 = arith.constant 0 : i32
    %c0_i32_0 = arith.constant 0 : i32
    %c0_i32_1 = arith.constant 0 : i32
    return %c0_i32, %c0_i32_0 : i32, i32
  }
  func.func @transform_6(%arg0: i32) -> (i32, i32) {
    %c0_i32 = arith.constant 0 : i32
    %c0_i32_0 = arith.constant 0 : i32
    %c0_i32_1 = arith.constant 0 : i32
    return %c0_i32, %c0_i32_0 : i32, i32
  }
  func.func @transform_7(%arg0: i32) -> (i32, i32, i32) {
    %c0_i32 = arith.constant 0 : i32
    %c0_i32_0 = arith.constant 0 : i32
    %c0_i32_1 = arith.constant 0 : i32
    %c0_i32_2 = arith.constant 0 : i32
    return %c0_i32, %c0_i32_0, %c0_i32_1 : i32, i32, i32
  }
  func.func @transform_8(%arg0: i32) -> (i32, i32) {
    %c0_i32 = arith.constant 0 : i32
    %c0_i32_0 = arith.constant 0 : i32
    %c0_i32_1 = arith.constant 0 : i32
    return %c0_i32, %c0_i32_0 : i32, i32
  }
}

</mosaic_0001>

<llo_original>
// kernel: dense_layer_forward.1
$region0: #{dense_layer_forward.1}
  #allocation0 [shape = 'u32[]', space=smem, size = 0x4, offset = 0x4, fixed_abs, tag = 'smem constant byte address 0x4 - core index']
  #allocation1 [shape = 'u32[144,128]{1,0:T(1,128)}', space=vmem, size = 0x12000, scoped, tag = 'internal scratch']
  %s0 = inlined_call_operand.vmem [shape: f32[4,512], index: 0, kind: input, shape index: {}]
  %s1 = inlined_call_operand.vmem [shape: f32[4,1], index: 1, kind: input, shape index: {}]
  %s2 = inlined_call_operand.vmem [shape: f32[4,1], index: 2, kind: input, shape index: {}]
  %s3 = inlined_call_operand.vmem [shape: bf16[32,4], index: 3, kind: input, shape index: {}]
  %s4 = inlined_call_operand.vmem [shape: f32[32,1], index: 4, kind: input, shape index: {}]
  %s5 = inlined_call_operand.vmem [shape: f32[32,1], index: 5, kind: input, shape index: {}]
  %s6 = inlined_call_operand.vmem [shape: bf16[8,288], index: 6, kind: input, shape index: {}]
  %s7 = inlined_call_operand.vmem [shape: f32[9,1,512], index: 7, kind: input, shape index: {}]
  %s8 = inlined_call_operand.vmem [shape: f32[8,512], index: 8, kind: output, shape index: {}]
  %s9 = sld [smem:[#allocation0]]
  $region42: #{dense_layer_forward.1} parent=0
    _
  %s11 = ssub.s32 1, %s9
  %s12 = scalar_select 0, %s11, %s9
  // Predicated region
  $region2: #{dense_layer_forward.1} parent=0 // pred_check
    _
  $region3: #{dense_layer_forward.1} parent=0 // pred_check_branch
    %14 = sbr.rel (0) target = $region5
  $region4: #{dense_layer_forward.1} parent=0 // pred_region
    _
  $region5: #{dense_layer_forward.1} parent=0 // pred_fallthru
    _
  // Predicated region
  $region6: #{dense_layer_forward.1} parent=0 // pred_check
    _
  $region7: #{dense_layer_forward.1} parent=0 // pred_check_branch
    %16 = sbr.rel (0) target = $region9
  $region8: #{dense_layer_forward.1} parent=0 // pred_region
    _
  $region9: #{dense_layer_forward.1} parent=0 // pred_fallthru
    _
  // Predicated region
  $region10: #{dense_layer_forward.1} parent=0 // pred_check
    _
  $region11: #{dense_layer_forward.1} parent=0 // pred_check_branch
    %18 = sbr.rel (0) target = $region13
  $region12: #{dense_layer_forward.1} parent=0 // pred_region
    _
  $region13: #{dense_layer_forward.1} parent=0 // pred_fallthru
    _
  // Predicated region
  $region14: #{dense_layer_forward.1} parent=0 // pred_check
    _
  $region15: #{dense_layer_forward.1} parent=0 // pred_check_branch
    %20 = sbr.rel (0) target = $region17
  $region16: #{dense_layer_forward.1} parent=0 // pred_region
    _
  $region17: #{dense_layer_forward.1} parent=0 // pred_fallthru
    _
  // Predicated region
  $region18: #{dense_layer_forward.1} parent=0 // pred_check
    _
  $region19: #{dense_layer_forward.1} parent=0 // pred_check_branch
    %22 = sbr.rel (0) target = $region21
  $region20: #{dense_layer_forward.1} parent=0 // pred_region
    _
  $region21: #{dense_layer_forward.1} parent=0 // pred_fallthru
    _
  // Predicated region
  $region22: #{dense_layer_forward.1} parent=0 // pred_check
    _
  $region23: #{dense_layer_forward.1} parent=0 // pred_check_branch
    %24 = sbr.rel (0) target = $region25
  $region24: #{dense_layer_forward.1} parent=0 // pred_region
    _
  $region25: #{dense_layer_forward.1} parent=0 // pred_fallthru
    _
  // Predicated region
  $region26: #{dense_layer_forward.1} parent=0 // pred_check
    _
  $region27: #{dense_layer_forward.1} parent=0 // pred_check_branch
    %26 = sbr.rel (0) target = $region29
  $region28: #{dense_layer_forward.1} parent=0 // pred_region
    _
  $region29: #{dense_layer_forward.1} parent=0 // pred_fallthru
    _
  // Predicated region
  $region30: #{dense_layer_forward.1} parent=0 // pred_check
    _
  $region31: #{dense_layer_forward.1} parent=0 // pred_check_branch
    %28 = sbr.rel (0) target = $region33
  $region32: #{dense_layer_forward.1} parent=0 // pred_region
    _
  $region33: #{dense_layer_forward.1} parent=0 // pred_fallthru
    _
  %v30 = vld [vmem:[%s0] sm:$0xff]
  %v31 = vld [vmem:[%s0 + $0x8] sm:$0xff]
  %v34 = vcombine.high %v30, %v30
  %v35 = vcombine.high %v31, %v31
  %vm38 = vcmask 1043456
  %v39 = vsel %vm38, %v30, 0.0
  %v40 = vsel %vm38, %v34, 0.0
  %v41 = vadd.f32 %v39, %v40
  %v42 = vsel %vm38, %v31, 0.0
  %v43 = vadd.f32 %v41, %v42
  %v44 = vsel %vm38, %v35, 0.0
  %v45 = vadd.f32 %v43, %v44
  %46 = vadd.xlane.f32.xlu0 %v45
  %v47 = vpop.xlane.xlu0 %46
  %v48 = vrcp.pop 512.0
  %v49 = vmul.f32 %v47, %v48
  %v52 = vunpack.c.l.s4 839922192
  %v53 = vunpack.c.0.s8 %v52
  %v54 = vlaneseq
  %v55 = vshrl.u32 %v54, 7
  %v56 = vsub.s32 %v53, %v55
  %v57 = vrot.slane %v49, %v56
  %v59 = vsub.f32 %v30, %v57
  %v60 = vsub.f32 %v31, %v57
  %v61 = vmul.f32 %v59, %v59
  %v62 = vmul.f32 %v60, %v60
  %v65 = vcombine.high %v61, %v61
  %v66 = vcombine.high %v62, %v62
  %v69 = vsel %vm38, %v61, 0.0
  %v70 = vsel %vm38, %v65, 0.0
  %v71 = vadd.f32 %v69, %v70
  %v72 = vsel %vm38, %v62, 0.0
  %v73 = vadd.f32 %v71, %v72
  %v74 = vsel %vm38, %v66, 0.0
  %v75 = vadd.f32 %v73, %v74
  %76 = vadd.xlane.f32.xlu0 %v75
  %v77 = vpop.xlane.xlu0 %76
  %v78 = vmul.f32 %v77, %v48
  %v79 = vld [vmem:[%s1] sm:$0xf]
  %v80 = vadd.f32 %v78, 1e-05
  %v81 = vrsqrt.pop %v80
  %v82 = vmul.f32 %v79, %v81
  %v83 = vld [vmem:[%s2] sm:$0xf]
  %v84 = vmul.f32 %v49, %v82
  %v85 = vsub.f32 %v83, %v84
  %87 = vset.pattern.permute.xlu0 0
  %88 = vperm.xlu0 %87, %v82
  %v89 = vpop.permute.xlu0 %88
  %v91 = vunpack.c.l.s4 839922192
  %v92 = vunpack.c.0.s8 %v91
  %v93 = vlaneseq
  %v94 = vshrl.u32 %v93, 7
  %v95 = vsub.s32 %v92, %v94
  %v96 = vrot.slane %v89, %v95
  %v98 = vmul.f32 %v30, %v96
  %v99 = vmul.f32 %v31, %v96
  %101 = vset.pattern.permute.xlu0 0
  %102 = vperm.xlu0 %101, %v85
  %v103 = vpop.permute.xlu0 %102
  %v105 = vunpack.c.l.s4 839922192
  %v106 = vunpack.c.0.s8 %v105
  %v107 = vlaneseq
  %v108 = vshrl.u32 %v107, 7
  %v109 = vsub.s32 %v106, %v108
  %v110 = vrot.slane %v103, %v109
  %v112 = vadd.f32 %v98, %v110
  %v113 = vadd.f32 %v99, %v110
  %v114 = vmax.f32 %v112, 0.0
  %v115 = vmax.f32 %v113, 0.0
  %v116 = vld [vmem:[%s3] sm:$0xf]
  %v117 = vld [vmem:[%s3 + $0x4] sm:$0xf]
  %v118 = vld [vmem:[%s3 + $0x8] sm:$0xf]
  %v119 = vld [vmem:[%s3 + $0xc] sm:$0xf]
  %v122 = vcombine.high %v114, %v114
  %v123 = vcombine.high %v115, %v115
  %v126 = vpack.c.bf16 %v114, %v114
  %v127 = vpack.c.bf16 %v122, %v122
  %v128 = vpack.c.bf16 %v115, %v115
  %v129 = vpack.c.bf16 %v123, %v123
  %v134 = vunpack.c.l.b16 %v116
  %v135 = vunpack.c.l.b16 %v117
  %v136 = vunpack.c.l.b16 %v118
  %v137 = vunpack.c.l.b16 %v119
  %v138 = vpack.c.b16 %v135, %v134
  %v139 = vpack.c.b16 %v137, %v136
  %vm140 = vcmask 31744
  %v142 = vsel %vm140, %v138, 0
  %v145 = vsel %vm140, %v139, 0
  %vm147 = vcmask 1041408
  %v149 = vsel %vm147, %v126, 0
  %v152 = vsel %vm147, %v127, 0
  %v155 = vsel %vm147, %v128, 0
  %v158 = vsel %vm147, %v129, 0
  %160 = vmatprep.subr.bf16.mxu0 %v152
  %161 = vmatpush1.bf16.msra.mxu0 %v149
  %162 = vmatprep.subr.bf16.mxu0 0
  %163 = vmatpush1.bf16.msra.mxu0 0
  %164 = vmatprep.subr.bf16.mxu0 0
  %165 = vmatpush1.bf16.msra.mxu0 0
  %166 = vmatprep.subr.bf16.mxu0 0
  %167 = vmatpush1.bf16.msra.mxu0 0
  %168 = vmatprep.subr.bf16.mxu0 0
  %169 = vmatpush1.bf16.msra.mxu0 0
  %170 = vmatprep.subr.bf16.mxu0 0
  %171 = vmatpush1.bf16.msra.mxu0 0
  %172 = vmatprep.subr.bf16.mxu0 0
  %173 = vmatpush1.bf16.msra.mxu0 0
  %174 = vmatprep.subr.bf16.mxu0 0
  %175 = vmatpush1.bf16.msra.mxu0 0
  %176 = vmatprep.subr.bf16.mxu0 0
  %177 = vmatpush1.bf16.msra.mxu0 0
  %178 = vmatprep.subr.bf16.mxu0 0
  %179 = vmatpush1.bf16.msra.mxu0 0
  %180 = vmatprep.subr.bf16.mxu0 0
  %181 = vmatpush1.bf16.msra.mxu0 0
  %182 = vmatprep.subr.bf16.mxu0 0
  %183 = vmatpush1.bf16.msra.mxu0 0
  %184 = vmatprep.subr.bf16.mxu0 0
  %185 = vmatpush1.bf16.msra.mxu0 0
  %186 = vmatprep.subr.bf16.mxu0 0
  %187 = vmatpush1.bf16.msra.mxu0 0
  %188 = vmatprep.subr.bf16.mxu0 0
  %189 = vmatpush1.bf16.msra.mxu0 0
  %190 = vmatprep.subr.bf16.mxu0 0
  %191 = vmatpush1.bf16.msra.mxu0 0
  %192 = vmatprep.mubr.bf16.mxu0 0
  %193 = vmatmul.mubr.bf16.gmra.mrb[0].mxu0 %v142
  %v194 = vpop.f32.mrb[0].mxu0
  %v195 = vadd.f32 0.0, %v194
  %v196 = vpop.f32.mrb[0].mxu0
  %v197 = vadd.f32 0.0, %v196
  %v198 = vpop.f32.mrb[0].mxu0
  %v199 = vadd.f32 0.0, %v198
  %v200 = vpop.f32.mrb[0].mxu0
  %v201 = vadd.f32 0.0, %v200
  %202 = vmatprep.mubr.bf16.mxu0 0
  %203 = vmatmul.mubr.bf16.gmra.mrb[0].mxu0 %v145
  %v204 = vpop.f32.mrb[0].mxu0
  %v205 = vadd.f32 0.0, %v204
  %v206 = vpop.f32.mrb[0].mxu0
  %v207 = vadd.f32 0.0, %v206
  %v208 = vpop.f32.mrb[0].mxu0
  %v209 = vadd.f32 0.0, %v208
  %v210 = vpop.f32.mrb[0].mxu0
  %v211 = vadd.f32 0.0, %v210
  %212 = vdwg.mxu0
  %213 = vmatprep.subr.bf16.mxu0 %v158
  %214 = vmatpush1.bf16.msra.mxu0 %v155
  %215 = vmatprep.subr.bf16.mxu0 0
  %216 = vmatpush1.bf16.msra.mxu0 0
  %217 = vmatprep.subr.bf16.mxu0 0
  %218 = vmatpush1.bf16.msra.mxu0 0
  %219 = vmatprep.subr.bf16.mxu0 0
  %220 = vmatpush1.bf16.msra.mxu0 0
  %221 = vmatprep.subr.bf16.mxu0 0
  %222 = vmatpush1.bf16.msra.mxu0 0
  %223 = vmatprep.subr.bf16.mxu0 0
  %224 = vmatpush1.bf16.msra.mxu0 0
  %225 = vmatprep.subr.bf16.mxu0 0
  %226 = vmatpush1.bf16.msra.mxu0 0
  %227 = vmatprep.subr.bf16.mxu0 0
  %228 = vmatpush1.bf16.msra.mxu0 0
  %229 = vmatprep.subr.bf16.mxu0 0
  %230 = vmatpush1.bf16.msra.mxu0 0
  %231 = vmatprep.subr.bf16.mxu0 0
  %232 = vmatpush1.bf16.msra.mxu0 0
  %233 = vmatprep.subr.bf16.mxu0 0
  %234 = vmatpush1.bf16.msra.mxu0 0
  %235 = vmatprep.subr.bf16.mxu0 0
  %236 = vmatpush1.bf16.msra.mxu0 0
  %237 = vmatprep.subr.bf16.mxu0 0
  %238 = vmatpush1.bf16.msra.mxu0 0
  %239 = vmatprep.subr.bf16.mxu0 0
  %240 = vmatpush1.bf16.msra.mxu0 0
  %241 = vmatprep.subr.bf16.mxu0 0
  %242 = vmatpush1.bf16.msra.mxu0 0
  %243 = vmatprep.subr.bf16.mxu0 0
  %244 = vmatpush1.bf16.msra.mxu0 0
  %245 = vmatprep.mubr.bf16.mxu0 0
  %246 = vmatmul.mubr.bf16.gmra.mrb[0].mxu0 %v142
  %v247 = vpop.f32.mrb[0].mxu0
  %v248 = vadd.f32 0.0, %v247
  %v249 = vpop.f32.mrb[0].mxu0
  %v250 = vadd.f32 0.0, %v249
  %v251 = vpop.f32.mrb[0].mxu0
  %v252 = vadd.f32 0.0, %v251
  %v253 = vpop.f32.mrb[0].mxu0
  %v254 = vadd.f32 0.0, %v253
  %255 = vmatprep.mubr.bf16.mxu0 0
  %256 = vmatmul.mubr.bf16.gmra.mrb[0].mxu0 %v145
  %v257 = vpop.f32.mrb[0].mxu0
  %v258 = vadd.f32 0.0, %v257
  %v259 = vpop.f32.mrb[0].mxu0
  %v260 = vadd.f32 0.0, %v259
  %v261 = vpop.f32.mrb[0].mxu0
  %v262 = vadd.f32 0.0, %v261
  %v263 = vpop.f32.mrb[0].mxu0
  %v264 = vadd.f32 0.0, %v263
  %265 = vdwg.mxu0
  %v266 = vadd.f32 %v195, %v197
  %v267 = vadd.f32 %v266, %v248
  %v268 = vadd.f32 %v267, %v250
  %269 = vadd.xlane.f32.xlu0 %v268
  %v270 = vpop.xlane.xlu0 %269
  %v271 = vadd.f32 %v199, %v201
  %v272 = vadd.f32 %v271, %v252
  %v273 = vadd.f32 %v272, %v254
  %274 = vadd.xlane.f32.xlu0 %v273
  %v275 = vpop.xlane.xlu0 %274
  %v276 = vadd.f32 %v205, %v207
  %v277 = vadd.f32 %v276, %v258
  %v278 = vadd.f32 %v277, %v260
  %279 = vadd.xlane.f32.xlu0 %v278
  %v280 = vpop.xlane.xlu0 %279
  %v281 = vadd.f32 %v209, %v211
  %v282 = vadd.f32 %v281, %v262
  %v283 = vadd.f32 %v282, %v264
  %284 = vadd.xlane.f32.xlu0 %v283
  %v285 = vpop.xlane.xlu0 %284
  %v286 = vmul.f32 %v270, %v48
  %v287 = vmul.f32 %v275, %v48
  %v288 = vmul.f32 %v280, %v48
  %v289 = vmul.f32 %v285, %v48
  %v290 = vsub.f32 %v195, %v286
  %v291 = vsub.f32 %v197, %v286
  %v292 = vsub.f32 %v248, %v286
  %v293 = vsub.f32 %v250, %v286
  %v294 = vsub.f32 %v199, %v287
  %v295 = vsub.f32 %v201, %v287
  %v296 = vsub.f32 %v252, %v287
  %v297 = vsub.f32 %v254, %v287
  %v298 = vsub.f32 %v205, %v288
  %v299 = vsub.f32 %v207, %v288
  %v300 = vsub.f32 %v258, %v288
  %v301 = vsub.f32 %v260, %v288
  %v302 = vsub.f32 %v209, %v289
  %v303 = vsub.f32 %v211, %v289
  %v304 = vsub.f32 %v262, %v289
  %v305 = vsub.f32 %v264, %v289
  %v306 = vmul.f32 %v290, %v290
  %v307 = vmul.f32 %v291, %v291
  %v308 = vmul.f32 %v292, %v292
  %v309 = vmul.f32 %v293, %v293
  %v310 = vmul.f32 %v294, %v294
  %v311 = vmul.f32 %v295, %v295
  %v312 = vmul.f32 %v296, %v296
  %v313 = vmul.f32 %v297, %v297
  %v314 = vmul.f32 %v298, %v298
  %v315 = vmul.f32 %v299, %v299
  %v316 = vmul.f32 %v300, %v300
  %v317 = vmul.f32 %v301, %v301
  %v318 = vmul.f32 %v302, %v302
  %v319 = vmul.f32 %v303, %v303
  %v320 = vmul.f32 %v304, %v304
  %v321 = vmul.f32 %v305, %v305
  %v322 = vadd.f32 %v306, %v307
  %v323 = vadd.f32 %v322, %v308
  %v324 = vadd.f32 %v323, %v309
  %325 = vadd.xlane.f32.xlu0 %v324
  %v326 = vpop.xlane.xlu0 %325
  %v327 = vadd.f32 %v310, %v311
  %v328 = vadd.f32 %v327, %v312
  %v329 = vadd.f32 %v328, %v313
  %330 = vadd.xlane.f32.xlu0 %v329
  %v331 = vpop.xlane.xlu0 %330
  %v332 = vadd.f32 %v314, %v315
  %v333 = vadd.f32 %v332, %v316
  %v334 = vadd.f32 %v333, %v317
  %335 = vadd.xlane.f32.xlu0 %v334
  %v336 = vpop.xlane.xlu0 %335
  %v337 = vadd.f32 %v318, %v319
  %v338 = vadd.f32 %v337, %v320
  %v339 = vadd.f32 %v338, %v321
  %340 = vadd.xlane.f32.xlu0 %v339
  %v341 = vpop.xlane.xlu0 %340
  %v342 = vmul.f32 %v326, %v48
  %v343 = vmul.f32 %v331, %v48
  %v344 = vmul.f32 %v336, %v48
  %v345 = vmul.f32 %v341, %v48
  %v346 = vld [vmem:[%s4] sm:$0xff]
  %v347 = vld [vmem:[%s4 + $0x8] sm:$0xff]
  %v348 = vld [vmem:[%s4 + $0x10] sm:$0xff]
  %v349 = vld [vmem:[%s4 + $0x18] sm:$0xff]
  %v350 = vadd.f32 %v342, 1e-05
  %v351 = vadd.f32 %v343, 1e-05
  %v352 = vadd.f32 %v344, 1e-05
  %v353 = vadd.f32 %v345, 1e-05
  %v354 = vrsqrt.pop %v350
  %v355 = vrsqrt.pop %v351
  %v356 = vrsqrt.pop %v352
  %v357 = vrsqrt.pop %v353
  %v358 = vmul.f32 %v346, %v354
  %v359 = vmul.f32 %v347, %v355
  %v360 = vmul.f32 %v348, %v356
  %v361 = vmul.f32 %v349, %v357
  %v362 = vld [vmem:[%s5] sm:$0xff]
  %v363 = vld [vmem:[%s5 + $0x8] sm:$0xff]
  %v364 = vld [vmem:[%s5 + $0x10] sm:$0xff]
  %v365 = vld [vmem:[%s5 + $0x18] sm:$0xff]
  %v366 = vmul.f32 %v286, %v358
  %v367 = vmul.f32 %v287, %v359
  %v368 = vmul.f32 %v288, %v360
  %v369 = vmul.f32 %v289, %v361
  %v370 = vsub.f32 %v362, %v366
  %v371 = vsub.f32 %v363, %v367
  %v372 = vsub.f32 %v364, %v368
  %v373 = vsub.f32 %v365, %v369
  %375 = vset.pattern.permute.xlu0 0
  %376 = vperm.xlu0 %375, %v358
  %v377 = vpop.permute.xlu0 %376
  %380 = vset.pattern.permute.xlu0 0
  %381 = vperm.xlu0 %380, %v359
  %v382 = vpop.permute.xlu0 %381
  %385 = vset.pattern.permute.xlu0 0
  %386 = vperm.xlu0 %385, %v360
  %v387 = vpop.permute.xlu0 %386
  %390 = vset.pattern.permute.xlu0 0
  %391 = vperm.xlu0 %390, %v361
  %v392 = vpop.permute.xlu0 %391
  %v394 = vmul.f32 %v195, %v377
  %v395 = vmul.f32 %v197, %v377
  %v396 = vmul.f32 %v248, %v377
  %v397 = vmul.f32 %v250, %v377
  %v398 = vmul.f32 %v199, %v382
  %v399 = vmul.f32 %v201, %v382
  %v400 = vmul.f32 %v252, %v382
  %v401 = vmul.f32 %v254, %v382
  %v402 = vmul.f32 %v205, %v387
  %v403 = vmul.f32 %v207, %v387
  %v404 = vmul.f32 %v258, %v387
  %v405 = vmul.f32 %v260, %v387
  %v406 = vmul.f32 %v209, %v392
  %v407 = vmul.f32 %v211, %v392
  %v408 = vmul.f32 %v262, %v392
  %v409 = vmul.f32 %v264, %v392
  %411 = vset.pattern.permute.xlu0 0
  %412 = vperm.xlu0 %411, %v370
  %v413 = vpop.permute.xlu0 %412
  %416 = vset.pattern.permute.xlu0 0
  %417 = vperm.xlu0 %416, %v371
  %v418 = vpop.permute.xlu0 %417
  %421 = vset.pattern.permute.xlu0 0
  %422 = vperm.xlu0 %421, %v372
  %v423 = vpop.permute.xlu0 %422
  %426 = vset.pattern.permute.xlu0 0
  %427 = vperm.xlu0 %426, %v373
  %v428 = vpop.permute.xlu0 %427
  %v430 = vadd.f32 %v394, %v413
  %v431 = vadd.f32 %v395, %v413
  %v432 = vadd.f32 %v396, %v413
  %v433 = vadd.f32 %v397, %v413
  %v434 = vadd.f32 %v398, %v418
  %v435 = vadd.f32 %v399, %v418
  %v436 = vadd.f32 %v400, %v418
  %v437 = vadd.f32 %v401, %v418
  %v438 = vadd.f32 %v402, %v423
  %v439 = vadd.f32 %v403, %v423
  %v440 = vadd.f32 %v404, %v423
  %v441 = vadd.f32 %v405, %v423
  %v442 = vadd.f32 %v406, %v428
  %v443 = vadd.f32 %v407, %v428
  %v444 = vadd.f32 %v408, %v428
  %v445 = vadd.f32 %v409, %v428
  %v446 = vmax.f32 %v430, 0.0
  %v447 = vmax.f32 %v431, 0.0
  %v448 = vmax.f32 %v432, 0.0
  %v449 = vmax.f32 %v433, 0.0
  %v450 = vmax.f32 %v434, 0.0
  %v451 = vmax.f32 %v435, 0.0
  %v452 = vmax.f32 %v436, 0.0
  %v453 = vmax.f32 %v437, 0.0
  %v454 = vmax.f32 %v438, 0.0
  %v455 = vmax.f32 %v439, 0.0
  %v456 = vmax.f32 %v440, 0.0
  %v457 = vmax.f32 %v441, 0.0
  %v458 = vmax.f32 %v442, 0.0
  %v459 = vmax.f32 %v443, 0.0
  %v460 = vmax.f32 %v444, 0.0
  %v461 = vmax.f32 %v445, 0.0
  %462 = vrot.lane.b32.xlu0 %v446, 17
  %v463 = vpop.permute.xlu0 %462
  %464 = vrot.lane.b32.xlu0 %v450, 17
  %v465 = vpop.permute.xlu0 %464
  %466 = vrot.lane.b32.xlu0 %v454, 17
  %v467 = vpop.permute.xlu0 %466
  %468 = vrot.lane.b32.xlu0 %v458, 17
  %v469 = vpop.permute.xlu0 %468
  %470 = vrot.lane.b32.xlu0 %v447, 17
  %v471 = vpop.permute.xlu0 %470
  %472 = vrot.lane.b32.xlu0 %v451, 17
  %v473 = vpop.permute.xlu0 %472
  %474 = vrot.lane.b32.xlu0 %v455, 17
  %v475 = vpop.permute.xlu0 %474
  %476 = vrot.lane.b32.xlu0 %v459, 17
  %v477 = vpop.permute.xlu0 %476
  %478 = vrot.lane.b32.xlu0 %v448, 17
  %v479 = vpop.permute.xlu0 %478
  %480 = vrot.lane.b32.xlu0 %v452, 17
  %v481 = vpop.permute.xlu0 %480
  %482 = vrot.lane.b32.xlu0 %v456, 17
  %v483 = vpop.permute.xlu0 %482
  %484 = vrot.lane.b32.xlu0 %v460, 17
  %v485 = vpop.permute.xlu0 %484
  %486 = vrot.lane.b32.xlu0 %v449, 17
  %v487 = vpop.permute.xlu0 %486
  %488 = vrot.lane.b32.xlu0 %v453, 17
  %v489 = vpop.permute.xlu0 %488
  %490 = vrot.lane.b32.xlu0 %v457, 17
  %v491 = vpop.permute.xlu0 %490
  %492 = vrot.lane.b32.xlu0 %v461, 17
  %v493 = vpop.permute.xlu0 %492
  %v494 = vlaneseq
  %v495 = vand.u32 %v494, 127
  %vm496 = vcmp.lt.s32.totalorder %v495, 17
  %v497 = vsel %vm496, %v479, %v487
  %v498 = vsel %vm496, %v481, %v489
  %v499 = vsel %vm496, %v483, %v491
  %v500 = vsel %vm496, %v485, %v493
  %v501 = vsel %vm496, %v471, %v479
  %v502 = vsel %vm496, %v473, %v481
  %v503 = vsel %vm496, %v475, %v483
  %v504 = vsel %vm496, %v477, %v485
  %v505 = vsel %vm496, %v463, %v471
  %v506 = vsel %vm496, %v465, %v473
  %v507 = vsel %vm496, %v467, %v475
  %v508 = vsel %vm496, %v469, %v477
  %v509 = vsel %vm496, %v487, %v463
  %v510 = vsel %vm496, %v489, %v465
  %v511 = vsel %vm496, %v491, %v467
  %v512 = vsel %vm496, %v493, %v469
  %v513 = vld [vmem:[%s7] sm:$0xf]
  %v515 = vlaneseq
  %v516 = vshrl.u32 %v515, 7
  %v517 = vsub.s32 0, %v516
  %v518 = vrot.slane %v513, %v517
  %v519 = vlaneseq
  %v520 = vshrl.u32 %v519, 7
  %v521 = vsub.s32 1, %v520
  %v522 = vrot.slane %v513, %v521
  %v523 = vlaneseq
  %v524 = vshrl.u32 %v523, 7
  %v525 = vsub.s32 2, %v524
  %v526 = vrot.slane %v513, %v525
  %v527 = vlaneseq
  %v528 = vshrl.u32 %v527, 7
  %v529 = vsub.s32 3, %v528
  %v530 = vrot.slane %v513, %v529
  %v535 = vmul.f32 %v509, %v518
  %v536 = vmul.f32 %v505, %v522
  %v537 = vmul.f32 %v501, %v526
  %v538 = vmul.f32 %v497, %v530
  %v539 = vmul.f32 %v510, %v518
  %v540 = vmul.f32 %v506, %v522
  %v541 = vmul.f32 %v502, %v526
  %v542 = vmul.f32 %v498, %v530
  %v543 = vmul.f32 %v511, %v518
  %v544 = vmul.f32 %v507, %v522
  %v545 = vmul.f32 %v503, %v526
  %v546 = vmul.f32 %v499, %v530
  %v547 = vmul.f32 %v512, %v518
  %v548 = vmul.f32 %v508, %v522
  %v549 = vmul.f32 %v504, %v526
  %v550 = vmul.f32 %v500, %v530
  %551 = vrot.lane.b32.xlu0 %v446, 16
  %v552 = vpop.permute.xlu0 %551
  %553 = vrot.lane.b32.xlu0 %v450, 16
  %v554 = vpop.permute.xlu0 %553
  %555 = vrot.lane.b32.xlu0 %v454, 16
  %v556 = vpop.permute.xlu0 %555
  %557 = vrot.lane.b32.xlu0 %v458, 16
  %v558 = vpop.permute.xlu0 %557
  %559 = vrot.lane.b32.xlu0 %v447, 16
  %v560 = vpop.permute.xlu0 %559
  %561 = vrot.lane.b32.xlu0 %v451, 16
  %v562 = vpop.permute.xlu0 %561
  %563 = vrot.lane.b32.xlu0 %v455, 16
  %v564 = vpop.permute.xlu0 %563
  %565 = vrot.lane.b32.xlu0 %v459, 16
  %v566 = vpop.permute.xlu0 %565
  %567 = vrot.lane.b32.xlu0 %v448, 16
  %v568 = vpop.permute.xlu0 %567
  %569 = vrot.lane.b32.xlu0 %v452, 16
  %v570 = vpop.permute.xlu0 %569
  %571 = vrot.lane.b32.xlu0 %v456, 16
  %v572 = vpop.permute.xlu0 %571
  %573 = vrot.lane.b32.xlu0 %v460, 16
  %v574 = vpop.permute.xlu0 %573
  %575 = vrot.lane.b32.xlu0 %v449, 16
  %v576 = vpop.permute.xlu0 %575
  %577 = vrot.lane.b32.xlu0 %v453, 16
  %v578 = vpop.permute.xlu0 %577
  %579 = vrot.lane.b32.xlu0 %v457, 16
  %v580 = vpop.permute.xlu0 %579
  %581 = vrot.lane.b32.xlu0 %v461, 16
  %v582 = vpop.permute.xlu0 %581
  %vm583 = vcmp.lt.s32.totalorder %v495, 16
  %v584 = vsel %vm583, %v568, %v576
  %v585 = vsel %vm583, %v570, %v578
  %v586 = vsel %vm583, %v572, %v580
  %v587 = vsel %vm583, %v574, %v582
  %v588 = vsel %vm583, %v560, %v568
  %v589 = vsel %vm583, %v562, %v570
  %v590 = vsel %vm583, %v564, %v572
  %v591 = vsel %vm583, %v566, %v574
  %v592 = vsel %vm583, %v552, %v560
  %v593 = vsel %vm583, %v554, %v562
  %v594 = vsel %vm583, %v556, %v564
  %v595 = vsel %vm583, %v558, %v566
  %v596 = vsel %vm583, %v576, %v552
  %v597 = vsel %vm583, %v578, %v554
  %v598 = vsel %vm583, %v580, %v556
  %v599 = vsel %vm583, %v582, %v558
  %s600 = scalar_lea.vmem %s7, 4
  %v601 = vld [vmem:[%s600] sm:$0xf]
  %v603 = vlaneseq
  %v604 = vshrl.u32 %v603, 7
  %v605 = vsub.s32 0, %v604
  %v606 = vrot.slane %v601, %v605
  %v607 = vlaneseq
  %v608 = vshrl.u32 %v607, 7
  %v609 = vsub.s32 1, %v608
  %v610 = vrot.slane %v601, %v609
  %v611 = vlaneseq
  %v612 = vshrl.u32 %v611, 7
  %v613 = vsub.s32 2, %v612
  %v614 = vrot.slane %v601, %v613
  %v615 = vlaneseq
  %v616 = vshrl.u32 %v615, 7
  %v617 = vsub.s32 3, %v616
  %v618 = vrot.slane %v601, %v617
  %v623 = vmul.f32 %v596, %v606
  %v624 = vmul.f32 %v592, %v610
  %v625 = vmul.f32 %v588, %v614
  %v626 = vmul.f32 %v584, %v618
  %v627 = vmul.f32 %v597, %v606
  %v628 = vmul.f32 %v593, %v610
  %v629 = vmul.f32 %v589, %v614
  %v630 = vmul.f32 %v585, %v618
  %v631 = vmul.f32 %v598, %v606
  %v632 = vmul.f32 %v594, %v610
  %v633 = vmul.f32 %v590, %v614
  %v634 = vmul.f32 %v586, %v618
  %v635 = vmul.f32 %v599, %v606
  %v636 = vmul.f32 %v595, %v610
  %v637 = vmul.f32 %v591, %v614
  %v638 = vmul.f32 %v587, %v618
  %639 = vrot.lane.b32.xlu0 %v446, 15
  %v640 = vpop.permute.xlu0 %639
  %641 = vrot.lane.b32.xlu0 %v450, 15
  %v642 = vpop.permute.xlu0 %641
  %643 = vrot.lane.b32.xlu0 %v454, 15
  %v644 = vpop.permute.xlu0 %643
  %645 = vrot.lane.b32.xlu0 %v458, 15
  %v646 = vpop.permute.xlu0 %645
  %647 = vrot.lane.b32.xlu0 %v447, 15
  %v648 = vpop.permute.xlu0 %647
  %649 = vrot.lane.b32.xlu0 %v451, 15
  %v650 = vpop.permute.xlu0 %649
  %651 = vrot.lane.b32.xlu0 %v455, 15
  %v652 = vpop.permute.xlu0 %651
  %653 = vrot.lane.b32.xlu0 %v459, 15
  %v654 = vpop.permute.xlu0 %653
  %655 = vrot.lane.b32.xlu0 %v448, 15
  %v656 = vpop.permute.xlu0 %655
  %657 = vrot.lane.b32.xlu0 %v452, 15
  %v658 = vpop.permute.xlu0 %657
  %659 = vrot.lane.b32.xlu0 %v456, 15
  %v660 = vpop.permute.xlu0 %659
  %661 = vrot.lane.b32.xlu0 %v460, 15
  %v662 = vpop.permute.xlu0 %661
  %663 = vrot.lane.b32.xlu0 %v449, 15
  %v664 = vpop.permute.xlu0 %663
  %665 = vrot.lane.b32.xlu0 %v453, 15
  %v666 = vpop.permute.xlu0 %665
  %667 = vrot.lane.b32.xlu0 %v457, 15
  %v668 = vpop.permute.xlu0 %667
  %669 = vrot.lane.b32.xlu0 %v461, 15
  %v670 = vpop.permute.xlu0 %669
  %vm671 = vcmp.lt.s32.totalorder %v495, 15
  %v672 = vsel %vm671, %v656, %v664
  %v673 = vsel %vm671, %v658, %v666
  %v674 = vsel %vm671, %v660, %v668
  %v675 = vsel %vm671, %v662, %v670
  %v676 = vsel %vm671, %v648, %v656
  %v677 = vsel %vm671, %v650, %v658
  %v678 = vsel %vm671, %v652, %v660
  %v679 = vsel %vm671, %v654, %v662
  %v680 = vsel %vm671, %v640, %v648
  %v681 = vsel %vm671, %v642, %v650
  %v682 = vsel %vm671, %v644, %v652
  %v683 = vsel %vm671, %v646, %v654
  %v684 = vsel %vm671, %v664, %v640
  %v685 = vsel %vm671, %v666, %v642
  %v686 = vsel %vm671, %v668, %v644
  %v687 = vsel %vm671, %v670, %v646
  %s688 = scalar_lea.vmem %s7, 8
  %v689 = vld [vmem:[%s688] sm:$0xf]
  %v691 = vlaneseq
  %v692 = vshrl.u32 %v691, 7
  %v693 = vsub.s32 0, %v692
  %v694 = vrot.slane %v689, %v693
  %v695 = vlaneseq
  %v696 = vshrl.u32 %v695, 7
  %v697 = vsub.s32 1, %v696
  %v698 = vrot.slane %v689, %v697
  %v699 = vlaneseq
  %v700 = vshrl.u32 %v699, 7
  %v701 = vsub.s32 2, %v700
  %v702 = vrot.slane %v689, %v701
  %v703 = vlaneseq
  %v704 = vshrl.u32 %v703, 7
  %v705 = vsub.s32 3, %v704
  %v706 = vrot.slane %v689, %v705
  %v711 = vmul.f32 %v684, %v694
  %v712 = vmul.f32 %v680, %v698
  %v713 = vmul.f32 %v676, %v702
  %v714 = vmul.f32 %v672, %v706
  %v715 = vmul.f32 %v685, %v694
  %v716 = vmul.f32 %v681, %v698
  %v717 = vmul.f32 %v677, %v702
  %v718 = vmul.f32 %v673, %v706
  %v719 = vmul.f32 %v686, %v694
  %v720 = vmul.f32 %v682, %v698
  %v721 = vmul.f32 %v678, %v702
  %v722 = vmul.f32 %v674, %v706
  %v723 = vmul.f32 %v687, %v694
  %v724 = vmul.f32 %v683, %v698
  %v725 = vmul.f32 %v679, %v702
  %v726 = vmul.f32 %v675, %v706
  %727 = vrot.lane.b32.xlu0 %v446, 1
  %v728 = vpop.permute.xlu0 %727
  %729 = vrot.lane.b32.xlu0 %v450, 1
  %v730 = vpop.permute.xlu0 %729
  %731 = vrot.lane.b32.xlu0 %v454, 1
  %v732 = vpop.permute.xlu0 %731
  %733 = vrot.lane.b32.xlu0 %v458, 1
  %v734 = vpop.permute.xlu0 %733
  %735 = vrot.lane.b32.xlu0 %v447, 1
  %v736 = vpop.permute.xlu0 %735
  %737 = vrot.lane.b32.xlu0 %v451, 1
  %v738 = vpop.permute.xlu0 %737
  %739 = vrot.lane.b32.xlu0 %v455, 1
  %v740 = vpop.permute.xlu0 %739
  %741 = vrot.lane.b32.xlu0 %v459, 1
  %v742 = vpop.permute.xlu0 %741
  %743 = vrot.lane.b32.xlu0 %v448, 1
  %v744 = vpop.permute.xlu0 %743
  %745 = vrot.lane.b32.xlu0 %v452, 1
  %v746 = vpop.permute.xlu0 %745
  %747 = vrot.lane.b32.xlu0 %v456, 1
  %v748 = vpop.permute.xlu0 %747
  %749 = vrot.lane.b32.xlu0 %v460, 1
  %v750 = vpop.permute.xlu0 %749
  %751 = vrot.lane.b32.xlu0 %v449, 1
  %v752 = vpop.permute.xlu0 %751
  %753 = vrot.lane.b32.xlu0 %v453, 1
  %v754 = vpop.permute.xlu0 %753
  %755 = vrot.lane.b32.xlu0 %v457, 1
  %v756 = vpop.permute.xlu0 %755
  %757 = vrot.lane.b32.xlu0 %v461, 1
  %v758 = vpop.permute.xlu0 %757
  %vm759 = vcmp.lt.s32.totalorder %v495, 1
  %v760 = vsel %vm759, %v744, %v752
  %v761 = vsel %vm759, %v746, %v754
  %v762 = vsel %vm759, %v748, %v756
  %v763 = vsel %vm759, %v750, %v758
  %v764 = vsel %vm759, %v736, %v744
  %v765 = vsel %vm759, %v738, %v746
  %v766 = vsel %vm759, %v740, %v748
  %v767 = vsel %vm759, %v742, %v750
  %v768 = vsel %vm759, %v728, %v736
  %v769 = vsel %vm759, %v730, %v738
  %v770 = vsel %vm759, %v732, %v740
  %v771 = vsel %vm759, %v734, %v742
  %v772 = vsel %vm759, %v752, %v728
  %v773 = vsel %vm759, %v754, %v730
  %v774 = vsel %vm759, %v756, %v732
  %v775 = vsel %vm759, %v758, %v734
  %s776 = scalar_lea.vmem %s7, 12
  %v777 = vld [vmem:[%s776] sm:$0xf]
  %v779 = vlaneseq
  %v780 = vshrl.u32 %v779, 7
  %v781 = vsub.s32 0, %v780
  %v782 = vrot.slane %v777, %v781
  %v783 = vlaneseq
  %v784 = vshrl.u32 %v783, 7
  %v785 = vsub.s32 1, %v784
  %v786 = vrot.slane %v777, %v785
  %v787 = vlaneseq
  %v788 = vshrl.u32 %v787, 7
  %v789 = vsub.s32 2, %v788
  %v790 = vrot.slane %v777, %v789
  %v791 = vlaneseq
  %v792 = vshrl.u32 %v791, 7
  %v793 = vsub.s32 3, %v792
  %v794 = vrot.slane %v777, %v793
  %v799 = vmul.f32 %v772, %v782
  %v800 = vmul.f32 %v768, %v786
  %v801 = vmul.f32 %v764, %v790
  %v802 = vmul.f32 %v760, %v794
  %v803 = vmul.f32 %v773, %v782
  %v804 = vmul.f32 %v769, %v786
  %v805 = vmul.f32 %v765, %v790
  %v806 = vmul.f32 %v761, %v794
  %v807 = vmul.f32 %v774, %v782
  %v808 = vmul.f32 %v770, %v786
  %v809 = vmul.f32 %v766, %v790
  %v810 = vmul.f32 %v762, %v794
  %v811 = vmul.f32 %v775, %v782
  %v812 = vmul.f32 %v771, %v786
  %v813 = vmul.f32 %v767, %v790
  %v814 = vmul.f32 %v763, %v794
  %815 = vrot.lane.b32.xlu0 %v446, 127
  %v816 = vpop.permute.xlu0 %815
  %817 = vrot.lane.b32.xlu0 %v450, 127
  %v818 = vpop.permute.xlu0 %817
  %819 = vrot.lane.b32.xlu0 %v454, 127
  %v820 = vpop.permute.xlu0 %819
  %821 = vrot.lane.b32.xlu0 %v458, 127
  %v822 = vpop.permute.xlu0 %821
  %823 = vrot.lane.b32.xlu0 %v447, 127
  %v824 = vpop.permute.xlu0 %823
  %825 = vrot.lane.b32.xlu0 %v451, 127
  %v826 = vpop.permute.xlu0 %825
  %827 = vrot.lane.b32.xlu0 %v455, 127
  %v828 = vpop.permute.xlu0 %827
  %829 = vrot.lane.b32.xlu0 %v459, 127
  %v830 = vpop.permute.xlu0 %829
  %831 = vrot.lane.b32.xlu0 %v448, 127
  %v832 = vpop.permute.xlu0 %831
  %833 = vrot.lane.b32.xlu0 %v452, 127
  %v834 = vpop.permute.xlu0 %833
  %835 = vrot.lane.b32.xlu0 %v456, 127
  %v836 = vpop.permute.xlu0 %835
  %837 = vrot.lane.b32.xlu0 %v460, 127
  %v838 = vpop.permute.xlu0 %837
  %839 = vrot.lane.b32.xlu0 %v449, 127
  %v840 = vpop.permute.xlu0 %839
  %841 = vrot.lane.b32.xlu0 %v453, 127
  %v842 = vpop.permute.xlu0 %841
  %843 = vrot.lane.b32.xlu0 %v457, 127
  %v844 = vpop.permute.xlu0 %843
  %845 = vrot.lane.b32.xlu0 %v461, 127
  %v846 = vpop.permute.xlu0 %845
  %vm847 = vcmp.lt.s32.totalorder %v495, 127
  %v848 = vsel %vm847, %v832, %v840
  %v849 = vsel %vm847, %v834, %v842
  %v850 = vsel %vm847, %v836, %v844
  %v851 = vsel %vm847, %v838, %v846
  %v852 = vsel %vm847, %v824, %v832
  %v853 = vsel %vm847, %v826, %v834
  %v854 = vsel %vm847, %v828, %v836
  %v855 = vsel %vm847, %v830, %v838
  %v856 = vsel %vm847, %v816, %v824
  %v857 = vsel %vm847, %v818, %v826
  %v858 = vsel %vm847, %v820, %v828
  %v859 = vsel %vm847, %v822, %v830
  %v860 = vsel %vm847, %v840, %v816
  %v861 = vsel %vm847, %v842, %v818
  %v862 = vsel %vm847, %v844, %v820
  %v863 = vsel %vm847, %v846, %v822
  %s864 = scalar_lea.vmem %s7, 20
  %v865 = vld [vmem:[%s864] sm:$0xf]
  %v867 = vlaneseq
  %v868 = vshrl.u32 %v867, 7
  %v869 = vsub.s32 0, %v868
  %v870 = vrot.slane %v865, %v869
  %v871 = vlaneseq
  %v872 = vshrl.u32 %v871, 7
  %v873 = vsub.s32 1, %v872
  %v874 = vrot.slane %v865, %v873
  %v875 = vlaneseq
  %v876 = vshrl.u32 %v875, 7
  %v877 = vsub.s32 2, %v876
  %v878 = vrot.slane %v865, %v877
  %v879 = vlaneseq
  %v880 = vshrl.u32 %v879, 7
  %v881 = vsub.s32 3, %v880
  %v882 = vrot.slane %v865, %v881
  %v887 = vmul.f32 %v856, %v870
  %v888 = vmul.f32 %v852, %v874
  %v889 = vmul.f32 %v848, %v878
  %v890 = vmul.f32 %v860, %v882
  %v891 = vmul.f32 %v857, %v870
  %v892 = vmul.f32 %v853, %v874
  %v893 = vmul.f32 %v849, %v878
  %v894 = vmul.f32 %v861, %v882
  %v895 = vmul.f32 %v858, %v870
  %v896 = vmul.f32 %v854, %v874
  %v897 = vmul.f32 %v850, %v878
  %v898 = vmul.f32 %v862, %v882
  %v899 = vmul.f32 %v859, %v870
  %v900 = vmul.f32 %v855, %v874
  %v901 = vmul.f32 %v851, %v878
  %v902 = vmul.f32 %v863, %v882
  %903 = vrot.lane.b32.xlu0 %v446, 113
  %v904 = vpop.permute.xlu0 %903
  %905 = vrot.lane.b32.xlu0 %v450, 113
  %v906 = vpop.permute.xlu0 %905
  %907 = vrot.lane.b32.xlu0 %v454, 113
  %v908 = vpop.permute.xlu0 %907
  %909 = vrot.lane.b32.xlu0 %v458, 113
  %v910 = vpop.permute.xlu0 %909
  %911 = vrot.lane.b32.xlu0 %v447, 113
  %v912 = vpop.permute.xlu0 %911
  %913 = vrot.lane.b32.xlu0 %v451, 113
  %v914 = vpop.permute.xlu0 %913
  %915 = vrot.lane.b32.xlu0 %v455, 113
  %v916 = vpop.permute.xlu0 %915
  %917 = vrot.lane.b32.xlu0 %v459, 113
  %v918 = vpop.permute.xlu0 %917
  %919 = vrot.lane.b32.xlu0 %v448, 113
  %v920 = vpop.permute.xlu0 %919
  %921 = vrot.lane.b32.xlu0 %v452, 113
  %v922 = vpop.permute.xlu0 %921
  %923 = vrot.lane.b32.xlu0 %v456, 113
  %v924 = vpop.permute.xlu0 %923
  %925 = vrot.lane.b32.xlu0 %v460, 113
  %v926 = vpop.permute.xlu0 %925
  %927 = vrot.lane.b32.xlu0 %v449, 113
  %v928 = vpop.permute.xlu0 %927
  %929 = vrot.lane.b32.xlu0 %v453, 113
  %v930 = vpop.permute.xlu0 %929
  %931 = vrot.lane.b32.xlu0 %v457, 113
  %v932 = vpop.permute.xlu0 %931
  %933 = vrot.lane.b32.xlu0 %v461, 113
  %v934 = vpop.permute.xlu0 %933
  %vm935 = vcmp.lt.s32.totalorder %v495, 113
  %v936 = vsel %vm935, %v920, %v928
  %v937 = vsel %vm935, %v922, %v930
  %v938 = vsel %vm935, %v924, %v932
  %v939 = vsel %vm935, %v926, %v934
  %v940 = vsel %vm935, %v912, %v920
  %v941 = vsel %vm935, %v914, %v922
  %v942 = vsel %vm935, %v916, %v924
  %v943 = vsel %vm935, %v918, %v926
  %v944 = vsel %vm935, %v904, %v912
  %v945 = vsel %vm935, %v906, %v914
  %v946 = vsel %vm935, %v908, %v916
  %v947 = vsel %vm935, %v910, %v918
  %v948 = vsel %vm935, %v928, %v904
  %v949 = vsel %vm935, %v930, %v906
  %v950 = vsel %vm935, %v932, %v908
  %v951 = vsel %vm935, %v934, %v910
  %s952 = scalar_lea.vmem %s7, 24
  %v953 = vld [vmem:[%s952] sm:$0xf]
  %v955 = vlaneseq
  %v956 = vshrl.u32 %v955, 7
  %v957 = vsub.s32 0, %v956
  %v958 = vrot.slane %v953, %v957
  %v959 = vlaneseq
  %v960 = vshrl.u32 %v959, 7
  %v961 = vsub.s32 1, %v960
  %v962 = vrot.slane %v953, %v961
  %v963 = vlaneseq
  %v964 = vshrl.u32 %v963, 7
  %v965 = vsub.s32 2, %v964
  %v966 = vrot.slane %v953, %v965
  %v967 = vlaneseq
  %v968 = vshrl.u32 %v967, 7
  %v969 = vsub.s32 3, %v968
  %v970 = vrot.slane %v953, %v969
  %v975 = vmul.f32 %v944, %v958
  %v976 = vmul.f32 %v940, %v962
  %v977 = vmul.f32 %v936, %v966
  %v978 = vmul.f32 %v948, %v970
  %v979 = vmul.f32 %v945, %v958
  %v980 = vmul.f32 %v941, %v962
  %v981 = vmul.f32 %v937, %v966
  %v982 = vmul.f32 %v949, %v970
  %v983 = vmul.f32 %v946, %v958
  %v984 = vmul.f32 %v942, %v962
  %v985 = vmul.f32 %v938, %v966
  %v986 = vmul.f32 %v950, %v970
  %v987 = vmul.f32 %v947, %v958
  %v988 = vmul.f32 %v943, %v962
  %v989 = vmul.f32 %v939, %v966
  %v990 = vmul.f32 %v951, %v970
  %991 = vrot.lane.b32.xlu0 %v446, 112
  %v992 = vpop.permute.xlu0 %991
  %993 = vrot.lane.b32.xlu0 %v450, 112
  %v994 = vpop.permute.xlu0 %993
  %995 = vrot.lane.b32.xlu0 %v454, 112
  %v996 = vpop.permute.xlu0 %995
  %997 = vrot.lane.b32.xlu0 %v458, 112
  %v998 = vpop.permute.xlu0 %997
  %999 = vrot.lane.b32.xlu0 %v447, 112
  %v1000 = vpop.permute.xlu0 %999
  %1001 = vrot.lane.b32.xlu0 %v451, 112
  %v1002 = vpop.permute.xlu0 %1001
  %1003 = vrot.lane.b32.xlu0 %v455, 112
  %v1004 = vpop.permute.xlu0 %1003
  %1005 = vrot.lane.b32.xlu0 %v459, 112
  %v1006 = vpop.permute.xlu0 %1005
  %1007 = vrot.lane.b32.xlu0 %v448, 112
  %v1008 = vpop.permute.xlu0 %1007
  %1009 = vrot.lane.b32.xlu0 %v452, 112
  %v1010 = vpop.permute.xlu0 %1009
  %1011 = vrot.lane.b32.xlu0 %v456, 112
  %v1012 = vpop.permute.xlu0 %1011
  %1013 = vrot.lane.b32.xlu0 %v460, 112
  %v1014 = vpop.permute.xlu0 %1013
  %1015 = vrot.lane.b32.xlu0 %v449, 112
  %v1016 = vpop.permute.xlu0 %1015
  %1017 = vrot.lane.b32.xlu0 %v453, 112
  %v1018 = vpop.permute.xlu0 %1017
  %1019 = vrot.lane.b32.xlu0 %v457, 112
  %v1020 = vpop.permute.xlu0 %1019
  %1021 = vrot.lane.b32.xlu0 %v461, 112
  %v1022 = vpop.permute.xlu0 %1021
  %vm1023 = vcmp.lt.s32.totalorder %v495, 112
  %v1024 = vsel %vm1023, %v1008, %v1016
  %v1025 = vsel %vm1023, %v1010, %v1018
  %v1026 = vsel %vm1023, %v1012, %v1020
  %v1027 = vsel %vm1023, %v1014, %v1022
  %v1028 = vsel %vm1023, %v1000, %v1008
  %v1029 = vsel %vm1023, %v1002, %v1010
  %v1030 = vsel %vm1023, %v1004, %v1012
  %v1031 = vsel %vm1023, %v1006, %v1014
  %v1032 = vsel %vm1023, %v992, %v1000
  %v1033 = vsel %vm1023, %v994, %v1002
  %v1034 = vsel %vm1023, %v996, %v1004
  %v1035 = vsel %vm1023, %v998, %v1006
  %v1036 = vsel %vm1023, %v1016, %v992
  %v1037 = vsel %vm1023, %v1018, %v994
  %v1038 = vsel %vm1023, %v1020, %v996
  %v1039 = vsel %vm1023, %v1022, %v998
  %s1040 = scalar_lea.vmem %s7, 28
  %v1041 = vld [vmem:[%s1040] sm:$0xf]
  %v1043 = vlaneseq
  %v1044 = vshrl.u32 %v1043, 7
  %v1045 = vsub.s32 0, %v1044
  %v1046 = vrot.slane %v1041, %v1045
  %v1047 = vlaneseq
  %v1048 = vshrl.u32 %v1047, 7
  %v1049 = vsub.s32 1, %v1048
  %v1050 = vrot.slane %v1041, %v1049
  %v1051 = vlaneseq
  %v1052 = vshrl.u32 %v1051, 7
  %v1053 = vsub.s32 2, %v1052
  %v1054 = vrot.slane %v1041, %v1053
  %v1055 = vlaneseq
  %v1056 = vshrl.u32 %v1055, 7
  %v1057 = vsub.s32 3, %v1056
  %v1058 = vrot.slane %v1041, %v1057
  %v1063 = vmul.f32 %v1032, %v1046
  %v1064 = vmul.f32 %v1028, %v1050
  %v1065 = vmul.f32 %v1024, %v1054
  %v1066 = vmul.f32 %v1036, %v1058
  %v1067 = vmul.f32 %v1033, %v1046
  %v1068 = vmul.f32 %v1029, %v1050
  %v1069 = vmul.f32 %v1025, %v1054
  %v1070 = vmul.f32 %v1037, %v1058
  %v1071 = vmul.f32 %v1034, %v1046
  %v1072 = vmul.f32 %v1030, %v1050
  %v1073 = vmul.f32 %v1026, %v1054
  %v1074 = vmul.f32 %v1038, %v1058
  %v1075 = vmul.f32 %v1035, %v1046
  %v1076 = vmul.f32 %v1031, %v1050
  %v1077 = vmul.f32 %v1027, %v1054
  %v1078 = vmul.f32 %v1039, %v1058
  %1079 = vrot.lane.b32.xlu0 %v446, 111
  %v1080 = vpop.permute.xlu0 %1079
  %1081 = vrot.lane.b32.xlu0 %v450, 111
  %v1082 = vpop.permute.xlu0 %1081
  %1083 = vrot.lane.b32.xlu0 %v454, 111
  %v1084 = vpop.permute.xlu0 %1083
  %1085 = vrot.lane.b32.xlu0 %v458, 111
  %v1086 = vpop.permute.xlu0 %1085
  %1087 = vrot.lane.b32.xlu0 %v447, 111
  %v1088 = vpop.permute.xlu0 %1087
  %1089 = vrot.lane.b32.xlu0 %v451, 111
  %v1090 = vpop.permute.xlu0 %1089
  %1091 = vrot.lane.b32.xlu0 %v455, 111
  %v1092 = vpop.permute.xlu0 %1091
  %1093 = vrot.lane.b32.xlu0 %v459, 111
  %v1094 = vpop.permute.xlu0 %1093
  %1095 = vrot.lane.b32.xlu0 %v448, 111
  %v1096 = vpop.permute.xlu0 %1095
  %1097 = vrot.lane.b32.xlu0 %v452, 111
  %v1098 = vpop.permute.xlu0 %1097
  %1099 = vrot.lane.b32.xlu0 %v456, 111
  %v1100 = vpop.permute.xlu0 %1099
  %1101 = vrot.lane.b32.xlu0 %v460, 111
  %v1102 = vpop.permute.xlu0 %1101
  %1103 = vrot.lane.b32.xlu0 %v449, 111
  %v1104 = vpop.permute.xlu0 %1103
  %1105 = vrot.lane.b32.xlu0 %v453, 111
  %v1106 = vpop.permute.xlu0 %1105
  %1107 = vrot.lane.b32.xlu0 %v457, 111
  %v1108 = vpop.permute.xlu0 %1107
  %1109 = vrot.lane.b32.xlu0 %v461, 111
  %v1110 = vpop.permute.xlu0 %1109
  %vm1111 = vcmp.lt.s32.totalorder %v495, 111
  %v1112 = vsel %vm1111, %v1096, %v1104
  %v1113 = vsel %vm1111, %v1098, %v1106
  %v1114 = vsel %vm1111, %v1100, %v1108
  %v1115 = vsel %vm1111, %v1102, %v1110
  %v1116 = vsel %vm1111, %v1088, %v1096
  %v1117 = vsel %vm1111, %v1090, %v1098
  %v1118 = vsel %vm1111, %v1092, %v1100
  %v1119 = vsel %vm1111, %v1094, %v1102
  %v1120 = vsel %vm1111, %v1080, %v1088
  %v1121 = vsel %vm1111, %v1082, %v1090
  %v1122 = vsel %vm1111, %v1084, %v1092
  %v1123 = vsel %vm1111, %v1086, %v1094
  %v1124 = vsel %vm1111, %v1104, %v1080
  %v1125 = vsel %vm1111, %v1106, %v1082
  %v1126 = vsel %vm1111, %v1108, %v1084
  %v1127 = vsel %vm1111, %v1110, %v1086
  %s1128 = scalar_lea.vmem %s7, 32
  %v1129 = vld [vmem:[%s1128] sm:$0xf]
  %v1131 = vlaneseq
  %v1132 = vshrl.u32 %v1131, 7
  %v1133 = vsub.s32 0, %v1132
  %v1134 = vrot.slane %v1129, %v1133
  %v1135 = vlaneseq
  %v1136 = vshrl.u32 %v1135, 7
  %v1137 = vsub.s32 1, %v1136
  %v1138 = vrot.slane %v1129, %v1137
  %v1139 = vlaneseq
  %v1140 = vshrl.u32 %v1139, 7
  %v1141 = vsub.s32 2, %v1140
  %v1142 = vrot.slane %v1129, %v1141
  %v1143 = vlaneseq
  %v1144 = vshrl.u32 %v1143, 7
  %v1145 = vsub.s32 3, %v1144
  %v1146 = vrot.slane %v1129, %v1145
  %v1151 = vmul.f32 %v1120, %v1134
  %v1152 = vmul.f32 %v1116, %v1138
  %v1153 = vmul.f32 %v1112, %v1142
  %v1154 = vmul.f32 %v1124, %v1146
  %v1155 = vmul.f32 %v1121, %v1134
  %v1156 = vmul.f32 %v1117, %v1138
  %v1157 = vmul.f32 %v1113, %v1142
  %v1158 = vmul.f32 %v1125, %v1146
  %v1159 = vmul.f32 %v1122, %v1134
  %v1160 = vmul.f32 %v1118, %v1138
  %v1161 = vmul.f32 %v1114, %v1142
  %v1162 = vmul.f32 %v1126, %v1146
  %v1163 = vmul.f32 %v1123, %v1134
  %v1164 = vmul.f32 %v1119, %v1138
  %v1165 = vmul.f32 %v1115, %v1142
  %v1166 = vmul.f32 %v1127, %v1146
  %v1167 = vpack.c.bf16 %v539, %v535
  %v1168 = vpack.c.bf16 %v540, %v536
  %v1169 = vpack.c.bf16 %v541, %v537
  %v1170 = vpack.c.bf16 %v542, %v538
  %v1171 = vpack.c.bf16 %v547, %v543
  %v1172 = vpack.c.bf16 %v548, %v544
  %v1173 = vpack.c.bf16 %v549, %v545
  %v1174 = vpack.c.bf16 %v550, %v546
  %v1175 = vpack.c.bf16 %v627, %v623
  %v1176 = vpack.c.bf16 %v628, %v624
  %v1177 = vpack.c.bf16 %v629, %v625
  %v1178 = vpack.c.bf16 %v630, %v626
  %v1179 = vpack.c.bf16 %v635, %v631
  %v1180 = vpack.c.bf16 %v636, %v632
  %v1181 = vpack.c.bf16 %v637, %v633
  %v1182 = vpack.c.bf16 %v638, %v634
  %v1183 = vpack.c.bf16 %v715, %v711
  %v1184 = vpack.c.bf16 %v716, %v712
  %v1185 = vpack.c.bf16 %v717, %v713
  %v1186 = vpack.c.bf16 %v718, %v714
  %v1187 = vpack.c.bf16 %v723, %v719
  %v1188 = vpack.c.bf16 %v724, %v720
  %v1189 = vpack.c.bf16 %v725, %v721
  %v1190 = vpack.c.bf16 %v726, %v722
  %v1191 = vpack.c.bf16 %v803, %v799
  %v1192 = vpack.c.bf16 %v804, %v800
  %v1193 = vpack.c.bf16 %v805, %v801
  %v1194 = vpack.c.bf16 %v806, %v802
  %v1195 = vpack.c.bf16 %v811, %v807
  %v1196 = vpack.c.bf16 %v812, %v808
  %v1197 = vpack.c.bf16 %v813, %v809
  %v1198 = vpack.c.bf16 %v814, %v810
  %v1199 = vpack.c.bf16 %v450, %v446
  %v1200 = vpack.c.bf16 %v451, %v447
  %v1201 = vpack.c.bf16 %v452, %v448
  %v1202 = vpack.c.bf16 %v453, %v449
  %v1203 = vpack.c.bf16 %v458, %v454
  %v1204 = vpack.c.bf16 %v459, %v455
  %v1205 = vpack.c.bf16 %v460, %v456
  %v1206 = vpack.c.bf16 %v461, %v457
  %v1207 = vpack.c.bf16 %v891, %v887
  %v1208 = vpack.c.bf16 %v892, %v888
  %v1209 = vpack.c.bf16 %v893, %v889
  %v1210 = vpack.c.bf16 %v894, %v890
  %v1211 = vpack.c.bf16 %v899, %v895
  %v1212 = vpack.c.bf16 %v900, %v896
  %v1213 = vpack.c.bf16 %v901, %v897
  %v1214 = vpack.c.bf16 %v902, %v898
  %v1215 = vpack.c.bf16 %v979, %v975
  %v1216 = vpack.c.bf16 %v980, %v976
  %v1217 = vpack.c.bf16 %v981, %v977
  %v1218 = vpack.c.bf16 %v982, %v978
  %v1219 = vpack.c.bf16 %v987, %v983
  %v1220 = vpack.c.bf16 %v988, %v984
  %v1221 = vpack.c.bf16 %v989, %v985
  %v1222 = vpack.c.bf16 %v990, %v986
  %v1223 = vpack.c.bf16 %v1067, %v1063
  %v1224 = vpack.c.bf16 %v1068, %v1064
  %v1225 = vpack.c.bf16 %v1069, %v1065
  %v1226 = vpack.c.bf16 %v1070, %v1066
  %v1227 = vpack.c.bf16 %v1075, %v1071
  %v1228 = vpack.c.bf16 %v1076, %v1072
  %v1229 = vpack.c.bf16 %v1077, %v1073
  %v1230 = vpack.c.bf16 %v1078, %v1074
  %v1231 = vpack.c.bf16 %v1155, %v1151
  %v1232 = vpack.c.bf16 %v1156, %v1152
  %v1233 = vpack.c.bf16 %v1157, %v1153
  %v1234 = vpack.c.bf16 %v1158, %v1154
  %v1235 = vpack.c.bf16 %v1163, %v1159
  %v1236 = vpack.c.bf16 %v1164, %v1160
  %v1237 = vpack.c.bf16 %v1165, %v1161
  %v1238 = vpack.c.bf16 %v1166, %v1162
  %v1239 = vld [vmem:[%s6] sm:$0xff]
  %v1240 = vld [vmem:[%s6 + $0x8] sm:$0xf]
  %v1243 = vunpack.c.l.b16 %v1239
  %v1244 = vunpack.c.h.b16 %v1239
  %v1245 = vunpack.c.l.b16 %v1240
  %v1246 = vpack.c.b16 %v1243, %v1243
  %v1247 = vpack.c.b16 %v1244, %v1244
  %v1248 = vpack.c.b16 %v1245, %v1245
  %vm1251 = vcmask 261120
  %v1253 = vsel %vm1251, %v1248, 0
  %1255 = vmatprep.subr.bf16.mxu0 %v1168
  %1256 = vmatpush1.bf16.msra.mxu0 %v1167
  %1257 = vmatprep.subr.bf16.mxu0 %v1172
  %1258 = vmatpush1.bf16.msra.mxu0 %v1171
  %1259 = vmatprep.subr.bf16.mxu0 %v1176
  %1260 = vmatpush1.bf16.msra.mxu0 %v1175
  %1261 = vmatprep.subr.bf16.mxu0 %v1180
  %1262 = vmatpush1.bf16.msra.mxu0 %v1179
  %1263 = vmatprep.subr.bf16.mxu0 %v1184
  %1264 = vmatpush1.bf16.msra.mxu0 %v1183
  %1265 = vmatprep.subr.bf16.mxu0 %v1188
  %1266 = vmatpush1.bf16.msra.mxu0 %v1187
  %1267 = vmatprep.subr.bf16.mxu0 %v1192
  %1268 = vmatpush1.bf16.msra.mxu0 %v1191
  %1269 = vmatprep.subr.bf16.mxu0 %v1196
  %1270 = vmatpush1.bf16.msra.mxu0 %v1195
  %1271 = vmatprep.subr.bf16.mxu0 %v1200
  %1272 = vmatpush1.bf16.msra.mxu0 %v1199
  %1273 = vmatprep.subr.bf16.mxu0 %v1204
  %1274 = vmatpush1.bf16.msra.mxu0 %v1203
  %1275 = vmatprep.subr.bf16.mxu0 %v1208
  %1276 = vmatpush1.bf16.msra.mxu0 %v1207
  %1277 = vmatprep.subr.bf16.mxu0 %v1212
  %1278 = vmatpush1.bf16.msra.mxu0 %v1211
  %1279 = vmatprep.subr.bf16.mxu0 %v1216
  %1280 = vmatpush1.bf16.msra.mxu0 %v1215
  %1281 = vmatprep.subr.bf16.mxu0 %v1220
  %1282 = vmatpush1.bf16.msra.mxu0 %v1219
  %1283 = vmatprep.subr.bf16.mxu0 %v1224
  %1284 = vmatpush1.bf16.msra.mxu0 %v1223
  %1285 = vmatprep.subr.bf16.mxu0 %v1228
  %1286 = vmatpush1.bf16.msra.mxu0 %v1227
  %1287 = vmatprep.mubr.bf16.mxu0 %v1247
  %1288 = vmatmul.mubr.bf16.gmra.mrb[0].mxu0 %v1246
  %v1289 = vpop.f32.mrb[0].mxu0
  %v1290 = vadd.f32 0.0, %v1289
  %v1291 = vpop.f32.mrb[0].mxu0
  %v1292 = vadd.f32 0.0, %v1291
  %v1293 = vpop.f32.mrb[0].mxu0
  %v1294 = vpop.f32.mrb[0].mxu0
  %1295 = vdwg.mxu0
  %1296 = vmatprep.subr.bf16.mxu0 %v1232
  %1297 = vmatpush1.bf16.msra.mxu0 %v1231
  %1298 = vmatprep.subr.bf16.mxu0 %v1236
  %1299 = vmatpush1.bf16.msra.mxu0 %v1235
  %1300 = vmatprep.subr.bf16.mxu0 0
  %1301 = vmatpush1.bf16.msra.mxu0 0
  %1302 = vmatprep.subr.bf16.mxu0 0
  %1303 = vmatpush1.bf16.msra.mxu0 0
  %1304 = vmatprep.subr.bf16.mxu0 0
  %1305 = vmatpush1.bf16.msra.mxu0 0
  %1306 = vmatprep.subr.bf16.mxu0 0
  %1307 = vmatpush1.bf16.msra.mxu0 0
  %1308 = vmatprep.subr.bf16.mxu0 0
  %1309 = vmatpush1.bf16.msra.mxu0 0
  %1310 = vmatprep.subr.bf16.mxu0 0
  %1311 = vmatpush1.bf16.msra.mxu0 0
  %1312 = vmatprep.subr.bf16.mxu0 0
  %1313 = vmatpush1.bf16.msra.mxu0 0
  %1314 = vmatprep.subr.bf16.mxu0 0
  %1315 = vmatpush1.bf16.msra.mxu0 0
  %1316 = vmatprep.subr.bf16.mxu0 0
  %1317 = vmatpush1.bf16.msra.mxu0 0
  %1318 = vmatprep.subr.bf16.mxu0 0
  %1319 = vmatpush1.bf16.msra.mxu0 0
  %1320 = vmatprep.subr.bf16.mxu0 0
  %1321 = vmatpush1.bf16.msra.mxu0 0
  %1322 = vmatprep.subr.bf16.mxu0 0
  %1323 = vmatpush1.bf16.msra.mxu0 0
  %1324 = vmatprep.subr.bf16.mxu0 0
  %1325 = vmatpush1.bf16.msra.mxu0 0
  %1326 = vmatprep.subr.bf16.mxu0 0
  %1327 = vmatpush1.bf16.msra.mxu0 0
  %1328 = vmatprep.mubr.bf16.mxu0 0
  %1329 = vmatmul.mubr.bf16.gmra.mrb[0].mxu0 %v1253
  %v1330 = vpop.f32.mrb[0].mxu0
  %v1331 = vadd.f32 %v1290, %v1330
  %v1332 = vpop.f32.mrb[0].mxu0
  %v1333 = vadd.f32 %v1292, %v1332
  %v1334 = vpop.f32.mrb[0].mxu0
  %v1335 = vpop.f32.mrb[0].mxu0
  %1336 = vdwg.mxu0
  %1337 = vmatprep.subr.bf16.mxu0 %v1170
  %1338 = vmatpush1.bf16.msra.mxu0 %v1169
  %1339 = vmatprep.subr.bf16.mxu0 %v1174
  %1340 = vmatpush1.bf16.msra.mxu0 %v1173
  %1341 = vmatprep.subr.bf16.mxu0 %v1178
  %1342 = vmatpush1.bf16.msra.mxu0 %v1177
  %1343 = vmatprep.subr.bf16.mxu0 %v1182
  %1344 = vmatpush1.bf16.msra.mxu0 %v1181
  %1345 = vmatprep.subr.bf16.mxu0 %v1186
  %1346 = vmatpush1.bf16.msra.mxu0 %v1185
  %1347 = vmatprep.subr.bf16.mxu0 %v1190
  %1348 = vmatpush1.bf16.msra.mxu0 %v1189
  %1349 = vmatprep.subr.bf16.mxu0 %v1194
  %1350 = vmatpush1.bf16.msra.mxu0 %v1193
  %1351 = vmatprep.subr.bf16.mxu0 %v1198
  %1352 = vmatpush1.bf16.msra.mxu0 %v1197
  %1353 = vmatprep.subr.bf16.mxu0 %v1202
  %1354 = vmatpush1.bf16.msra.mxu0 %v1201
  %1355 = vmatprep.subr.bf16.mxu0 %v1206
  %1356 = vmatpush1.bf16.msra.mxu0 %v1205
  %1357 = vmatprep.subr.bf16.mxu0 %v1210
  %1358 = vmatpush1.bf16.msra.mxu0 %v1209
  %1359 = vmatprep.subr.bf16.mxu0 %v1214
  %1360 = vmatpush1.bf16.msra.mxu0 %v1213
  %1361 = vmatprep.subr.bf16.mxu0 %v1218
  %1362 = vmatpush1.bf16.msra.mxu0 %v1217
  %1363 = vmatprep.subr.bf16.mxu0 %v1222
  %1364 = vmatpush1.bf16.msra.mxu0 %v1221
  %1365 = vmatprep.subr.bf16.mxu0 %v1226
  %1366 = vmatpush1.bf16.msra.mxu0 %v1225
  %1367 = vmatprep.subr.bf16.mxu0 %v1230
  %1368 = vmatpush1.bf16.msra.mxu0 %v1229
  %1369 = vmatprep.mubr.bf16.mxu0 %v1247
  %1370 = vmatmul.mubr.bf16.gmra.mrb[0].mxu0 %v1246
  %v1371 = vpop.f32.mrb[0].mxu0
  %v1372 = vadd.f32 0.0, %v1371
  %v1373 = vpop.f32.mrb[0].mxu0
  %v1374 = vadd.f32 0.0, %v1373
  %v1375 = vpop.f32.mrb[0].mxu0
  %v1376 = vpop.f32.mrb[0].mxu0
  %1377 = vdwg.mxu0
  %1378 = vmatprep.subr.bf16.mxu0 %v1234
  %1379 = vmatpush1.bf16.msra.mxu0 %v1233
  %1380 = vmatprep.subr.bf16.mxu0 %v1238
  %1381 = vmatpush1.bf16.msra.mxu0 %v1237
  %1382 = vmatprep.subr.bf16.mxu0 0
  %1383 = vmatpush1.bf16.msra.mxu0 0
  %1384 = vmatprep.subr.bf16.mxu0 0
  %1385 = vmatpush1.bf16.msra.mxu0 0
  %1386 = vmatprep.subr.bf16.mxu0 0
  %1387 = vmatpush1.bf16.msra.mxu0 0
  %1388 = vmatprep.subr.bf16.mxu0 0
  %1389 = vmatpush1.bf16.msra.mxu0 0
  %1390 = vmatprep.subr.bf16.mxu0 0
  %1391 = vmatpush1.bf16.msra.mxu0 0
  %1392 = vmatprep.subr.bf16.mxu0 0
  %1393 = vmatpush1.bf16.msra.mxu0 0
  %1394 = vmatprep.subr.bf16.mxu0 0
  %1395 = vmatpush1.bf16.msra.mxu0 0
  %1396 = vmatprep.subr.bf16.mxu0 0
  %1397 = vmatpush1.bf16.msra.mxu0 0
  %1398 = vmatprep.subr.bf16.mxu0 0
  %1399 = vmatpush1.bf16.msra.mxu0 0
  %1400 = vmatprep.subr.bf16.mxu0 0
  %1401 = vmatpush1.bf16.msra.mxu0 0
  %1402 = vmatprep.subr.bf16.mxu0 0
  %1403 = vmatpush1.bf16.msra.mxu0 0
  %1404 = vmatprep.subr.bf16.mxu0 0
  %1405 = vmatpush1.bf16.msra.mxu0 0
  %1406 = vmatprep.subr.bf16.mxu0 0
  %1407 = vmatpush1.bf16.msra.mxu0 0
  %1408 = vmatprep.subr.bf16.mxu0 0
  %1409 = vmatpush1.bf16.msra.mxu0 0
  %1410 = vmatprep.mubr.bf16.mxu0 0
  %1411 = vmatmul.mubr.bf16.gmra.mrb[0].mxu0 %v1253
  %v1412 = vpop.f32.mrb[0].mxu0
  %v1413 = vadd.f32 %v1372, %v1412
  %v1414 = vpop.f32.mrb[0].mxu0
  %v1415 = vadd.f32 %v1374, %v1414
  %v1416 = vpop.f32.mrb[0].mxu0
  %v1417 = vpop.f32.mrb[0].mxu0
  %1418 = vdwg.mxu0
  %1419 = vst [vmem:[%s8] sm:$0xff] %v1331
  %1420 = vst [vmem:[%s8 + $0x8] sm:$0xff] %v1333
  %1421 = vst [vmem:[%s8 + $0x10] sm:$0xff] %v1413
  %1422 = vst [vmem:[%s8 + $0x18] sm:$0xff] %v1415
  // Predicated region
  $region34: #{dense_layer_forward.1} parent=0 // pred_check
    _
  $region35: #{dense_layer_forward.1} parent=0 // pred_check_branch
    %1424 = sbr.rel (0) target = $region37
  $region36: #{dense_layer_forward.1} parent=0 // pred_region
    _
  $region37: #{dense_layer_forward.1} parent=0 // pred_fallthru
    _
  // Predicated region
  $region38: #{dense_layer_forward.1} parent=0 // pred_check
    _
  $region39: #{dense_layer_forward.1} parent=0 // pred_check_branch
    %1426 = sbr.rel (0) target = $region41
  $region40: #{dense_layer_forward.1} parent=0 // pred_region
    _
  $region41: #{dense_layer_forward.1} parent=0 // pred_fallthru
    _

</llo_original>
